<compile_context>
chip_gen: v7x
topology: tpu7x:2x2x1
jax: 0.10.0
libtpu: 0.0.40
codegen_flags: <defaults>
</compile_context>

<pallas_src>
import numpy as np
import jax
import jax.numpy as jnp
from jax import lax
from jax.experimental import pallas as pl
from jax.experimental.pallas import tpu as pltpu


def _padding(downsample, kernel_size):
    """Compute required padding (same formula as the PyTorch module)."""
    return max(0, int(np.floor((kernel_size - downsample + 1) / 2)))


def _round_up(v, m):
    return (v + m - 1) // m * m


def _choose_lout_tile(lout, max_tile):
    """Largest output-length tile <= max_tile that divides Lout and keeps blocks 8-aligned."""
    if lout <= max_tile:
        return lout
    for t in range(min(max_tile, lout - 1), 7, -1):
        if t % 8 == 0 and lout % t == 0:
            return t
    return lout  # no aligned divisor found -> fall back to a single L tile


def _make_kernel(*, L, TL, TLout, HW, k, d, p2, has_skip_conv, fold1, fold2):
    """Fused ResBlock1d kernel body. One (batch, L-tile) per grid step."""

    def kernel(xw_ref, y_ref, w1_ref, w2_ref, wskip_ref,
               s1_ref, b1_ref, s2_ref, b2_ref,
               ox_ref, oy_ref, h_ref):
        t = pl.program_id(1)

        # ---- conv1: im2col -> single fat matmul (contraction dim = k*cinP) ------
        if fold1:
            xcols = jnp.concatenate(
                [xw_ref[pl.ds(dk, HW), :] for dk in range(k)], axis=1)
            acc1 = jnp.dot(xcols, w1_ref[...], preferred_element_type=jnp.float32)
        else:  # channels already wide enough to feed the MXU per tap
            acc1 = jnp.dot(xw_ref[pl.ds(0, HW), :], w1_ref[0],
                           preferred_element_type=jnp.float32)
            for dk in range(1, k):
                acc1 = acc1 + jnp.dot(xw_ref[pl.ds(dk, HW), :], w1_ref[dk],
                                      preferred_element_type=jnp.float32)

        # ---- bn1 (inference affine) + relu; dropout1 == identity ---------------
        h = jnp.maximum(acc1 * s1_ref[...] + b1_ref[...], 0.0)

        # rows of this window falling outside [0, L) are conv2's zero padding:
        # fold the zeroing into the single scratch store (no full-buffer memset).
        gh = t * TL - p2 + lax.broadcasted_iota(jnp.int32, (HW, 1), 0)
        h = jnp.where(jnp.logical_and(gh >= 0, gh < L), h, 0.0)
        h_ref[...] = h.astype(h_ref.dtype)

        # ---- conv2: kernel k, stride d, im2col over the k (strided) taps --------
        def h_tap(dk):
            if d > 1:
                return h_ref[pl.ds(dk, TLout, stride=d), :]
            return h_ref[pl.ds(dk, TLout), :]

        if fold2:
            hcols = jnp.concatenate([h_tap(dk) for dk in range(k)], axis=1)
            acc2 = jnp.dot(hcols, w2_ref[...], preferred_element_type=jnp.float32)
        else:
            acc2 = jnp.dot(h_tap(0), w2_ref[0], preferred_element_type=jnp.float32)
            for dk in range(1, k):
                acc2 = acc2 + jnp.dot(h_tap(dk), w2_ref[dk],
                                      preferred_element_type=jnp.float32)

        # ---- skip path: maxpool(d), then 1x1 conv if channel counts differ ------
        if d > 1:
            ys = y_ref[pl.ds(0, TLout, stride=d), :]
            for j in range(1, d):
                ys = jnp.maximum(ys, y_ref[pl.ds(j, TLout, stride=d), :])
        else:
            ys = y_ref[...]
        if has_skip_conv:
            ys = jnp.dot(ys, wskip_ref[...], preferred_element_type=jnp.float32)
        else:
            ys = ys.astype(jnp.float32)

        # ---- residual add, bn2 + relu (dropout2 == identity) --------------------
        s = acc2 + ys                                  # x += y
        oy_ref[...] = s.astype(oy_ref.dtype)           # y = x  (pre-bn2 copy)
        ox_ref[...] = jnp.maximum(s * s2_ref[...] + b2_ref[...],
                                  0.0).astype(ox_ref.dtype)

    return kernel


def resblock1d_forward(x_ncl, y_ncl, params, *, downsample, kernel_size,
                       max_lout_tile=256, compute_dtype=None):
    """Fused ResBlock1d forward. Inputs/outputs use the PyTorch (N, C, L) layout."""
    if kernel_size % 2 == 0:
        raise ValueError("only odd kernel_size supported")
    N, cin, L = x_ncl.shape
    k, d = kernel_size, downsample
    cout = params["w1"].shape[-1]
    has_skip_conv = params.get("wskip", None) is not None
    assert has_skip_conv == (cin != cout), \
        "params['wskip'] must be provided iff n_filters_in != n_filters_out"

    p1 = _padding(1, k)
    p2 = _padding(d, k)
    Lout = (L + 2 * p2 - k) // d + 1
    Lskip = (L - d) // d + 1 if d > 1 else L
    assert Lskip == Lout, "main path and skip path lengths must match"

    out_dtype = x_ncl.dtype
    compute_dtype = out_dtype if compute_dtype is None else compute_dtype

    LANE = 128
    cinP, coutP = _round_up(cin, LANE), _round_up(cout, LANE)
    fold1 = (k > 1) and (cinP < 256)     # fold taps only while contraction dim is narrow
    fold2 = (k > 1) and (coutP < 256)

    TLout = _choose_lout_tile(Lout, max_lout_tile)   # output rows per grid step
    nL = Lout // TLout
    TL = TLout * d                 # conv2-input (h) rows consumed per output tile
    HW = TL + k - d                # h-window rows per tile (incl. conv2 halo / padding)
    XW = HW + k - 1                # x rows per tile window (incl. conv1 halo)

    # ---- channels-last, lane padding, per-tile x windows with halo ---------------
    x_nlc = jnp.transpose(x_ncl, (0, 2, 1))
    y_nlc = jnp.transpose(y_ncl, (0, 2, 1))
    left = p1 + p2
    total = (nL - 1) * TL + XW
    right = max(0, total - (L + left))
    xb = jnp.pad(x_nlc, ((0, 0), (left, right), (0, cinP - cin))).astype(compute_dtype)
    xw = jnp.stack([xb[:, t * TL:t * TL + XW, :] for t in range(nL)], axis=1)
    xw = xw.reshape(N * nL, XW, cinP)
    yp = jnp.pad(y_nlc, ((0, 0), (0, 0), (0, cinP - cin))).astype(compute_dtype)

    # ---- weights: lane-pad channels; fold taps into the contraction dim ----------
    w1 = jnp.pad(params["w1"],
                 ((0, 0), (0, cinP - cin), (0, coutP - cout))).astype(compute_dtype)
    w2 = jnp.pad(params["w2"],
                 ((0, 0), (0, coutP - cout), (0, coutP - cout))).astype(compute_dtype)
    if fold1:
        w1 = w1.reshape(k * cinP, coutP)
        w1_spec = pl.BlockSpec((k * cinP, coutP), lambda n, t: (0, 0))
    else:
        w1_spec = pl.BlockSpec((k, cinP, coutP), lambda n, t: (0, 0, 0))
    if fold2:
        w2 = w2.reshape(k * coutP, coutP)
        w2_spec = pl.BlockSpec((k * coutP, coutP), lambda n, t: (0, 0))
    else:
        w2_spec = pl.BlockSpec((k, coutP, coutP), lambda n, t: (0, 0, 0))
    if has_skip_conv:
        wskip = jnp.pad(params["wskip"], ((0, cinP - cin), (0, coutP - cout)))
    else:
        wskip = jnp.zeros((cinP, coutP), jnp.float32)   # placeholder, unused in kernel
    wskip = wskip.astype(compute_dtype)

    def _vec(v):   # BN scale/bias, kept in f32 for the VPU math
        v = jnp.reshape(jnp.asarray(v, jnp.float32), (1, cout))
        return jnp.pad(v, ((0, 0), (0, coutP - cout)))
    s1, b1 = _vec(params["s1"]), _vec(params["b1"])
    s2, b2 = _vec(params["s2"]), _vec(params["b2"])

    kernel = _make_kernel(L=L, TL=TL, TLout=TLout, HW=HW, k=k, d=d, p2=p2,
                          has_skip_conv=has_skip_conv, fold1=fold1, fold2=fold2)

    grid_spec = pltpu.PrefetchScalarGridSpec(
        num_scalar_prefetch=0,
        grid=(N, nL),
        in_specs=[
            pl.BlockSpec((None, XW, cinP), lambda n, t: (n * nL + t, 0, 0)),  # x window
            pl.BlockSpec((None, TL, cinP), lambda n, t: (n, t, 0)),           # y tile
            w1_spec,                                                          # w1
            w2_spec,                                                          # w2
            pl.BlockSpec((cinP, coutP), lambda n, t: (0, 0)),                 # wskip
            pl.BlockSpec((1, coutP), lambda n, t: (0, 0)),                    # bn1 scale
            pl.BlockSpec((1, coutP), lambda n, t: (0, 0)),                    # bn1 bias
            pl.BlockSpec((1, coutP), lambda n, t: (0, 0)),                    # bn2 scale
            pl.BlockSpec((1, coutP), lambda n, t: (0, 0)),                    # bn2 bias
        ],
        out_specs=[
            pl.BlockSpec((None, TLout, coutP), lambda n, t: (n, t, 0)),       # x out
            pl.BlockSpec((None, TLout, coutP), lambda n, t: (n, t, 0)),       # y out
        ],
        scratch_shapes=[pltpu.VMEM((HW, coutP), compute_dtype)],
    )

    out_x, out_y = pl.pallas_call(
        kernel,
        out_shape=(jax.ShapeDtypeStruct((N, Lout, coutP), out_dtype),
                   jax.ShapeDtypeStruct((N, Lout, coutP), out_dtype)),
        grid_spec=grid_spec,
        compiler_params=pltpu.CompilerParams(
            dimension_semantics=("parallel", "parallel"),
            vmem_limit_bytes=48 * 1024 * 1024),
    )(xw, yp, w1, w2, wskip, s1, b1, s2, b2)

    # back to (N, C, L), dropping the lane-padding channels
    out_x = jnp.transpose(out_x[:, :, :cout], (0, 2, 1))
    out_y = jnp.transpose(out_y[:, :, :cout], (0, 2, 1))
    return out_x, out_y


# ----------------------------- pure-JAX reference ---------------------------------
def _conv1d(x, w_oik, stride, pad):
    return lax.conv_general_dilated(
        x, w_oik, window_strides=(stride,), padding=[(pad, pad)],
        dimension_numbers=("NCH", "OIH", "NCH"))


def ref_forward(x, y, tp, *, downsample, kernel_size):
    k, d = kernel_size, downsample
    p1, p2 = _padding(1, k), _padding(d, k)
    ys = y
    if d > 1:
        ys = lax.reduce_window(ys, -jnp.inf, lax.max,
                               window_dimensions=(1, 1, d),
                               window_strides=(1, 1, d), padding="VALID")
    if tp["wskip_t"] is not None:
        ys = _conv1d(ys, tp["wskip_t"], 1, 0)
    h = _conv1d(x, tp["w1_t"], 1, p1)
    h = h * tp["s1"][None, :, None] + tp["b1"][None, :, None]
    h = jnp.maximum(h, 0.0)
    h = _conv1d(h, tp["w2_t"], d, p2)
    s = h + ys
    out_x = jnp.maximum(s * tp["s2"][None, :, None] + tp["b2"][None, :, None], 0.0)
    return out_x, s


def _make_params(key, cin, cout, k, eps=1e-5):
    ks = jax.random.split(key, 11)
    w1_t = 0.1 * jax.random.normal(ks[0], (cout, cin, k), jnp.float32)
    w2_t = 0.1 * jax.random.normal(ks[1], (cout, cout, k), jnp.float32)
    wskip_t = (0.1 * jax.random.normal(ks[2], (cout, cin, 1), jnp.float32)
               if cin != cout else None)
    g1 = 1.0 + 0.1 * jax.random.normal(ks[3], (cout,), jnp.float32)
    be1 = 0.1 * jax.random.normal(ks[4], (cout,), jnp.float32)
    rm1 = 0.05 * jax.random.normal(ks[5], (cout,), jnp.float32)
    rv1 = 0.9 + 0.2 * jax.random.uniform(ks[6], (cout,), jnp.float32)
    g2 = 1.0 + 0.1 * jax.random.normal(ks[7], (cout,), jnp.float32)
    be2 = 0.1 * jax.random.normal(ks[8], (cout,), jnp.float32)
    rm2 = 0.05 * jax.random.normal(ks[9], (cout,), jnp.float32)
    rv2 = 0.9 + 0.2 * jax.random.uniform(ks[10], (cout,), jnp.float32)
    s1 = g1 / jnp.sqrt(rv1 + eps); b1 = be1 - rm1 * s1
    s2 = g2 / jnp.sqrt(rv2 + eps); b2 = be2 - rm2 * s2
    params = {
        "w1": jnp.transpose(w1_t, (2, 1, 0)),                 # (K, CIN, COUT)
        "w2": jnp.transpose(w2_t, (2, 1, 0)),                 # (K, COUT, COUT)
        "wskip": None if wskip_t is None
                 else jnp.transpose(wskip_t[:, :, 0], (1, 0)),  # (CIN, COUT)
        "s1": s1, "b1": b1, "s2": s2, "b2": b2,
    }
    torch_params = {"w1_t": w1_t, "w2_t": w2_t, "wskip_t": wskip_t,
                    "s1": s1, "b1": b1, "s2": s2, "b2": b2}
    return params, torch_params


if __name__ == "__main__":
    key = jax.random.PRNGKey(0)
    cases = [
        # standard: skip conv + maxpool, single L tile
        dict(N=2, cin=4, cout=8, L=16, k=3, d=2, max_lout_tile=256),
        # multi L-tile path (forces nL=4)
        dict(N=2, cin=4, cout=8, L=64, k=3, d=2, max_lout_tile=8),
        # identity skip (cin == cout), no downsampling, k=5
        dict(N=2, cin=8, cout=8, L=16, k=5, d=1, max_lout_tile=256),
    ]
    for i, c in enumerate(cases):
        kp, kx, ky = jax.random.split(jax.random.fold_in(key, i), 3)
        params, torch_params = _make_params(kp, c["cin"], c["cout"], c["k"])
        x = jax.random.normal(kx, (c["N"], c["cin"], c["L"]), jnp.float32)
        y = jax.random.normal(ky, (c["N"], c["cin"], c["L"]), jnp.float32)

        out_x, out_y = resblock1d_forward(
            x, y, params, downsample=c["d"], kernel_size=c["k"],
            max_lout_tile=c["max_lout_tile"])
        out_x, out_y = jax.block_until_ready((out_x, out_y))

        ref_x, ref_y = ref_forward(x, y, torch_params,
                                   downsample=c["d"], kernel_size=c["k"])
        lout = c["L"] // c["d"]
        assert out_x.shape == (c["N"], c["cout"], lout)
        assert out_y.shape == (c["N"], c["cout"], lout)
        np.testing.assert_allclose(np.asarray(out_x), np.asarray(ref_x),
                                   rtol=1e-4, atol=1e-4)
        np.testing.assert_allclose(np.asarray(out_y), np.asarray(ref_y),
                                   rtol=1e-4, atol=1e-4)

    print("KERNEL_OK")
</pallas_src>

<mosaic_0001>
module attributes {stable_mosaic.version = 11 : i64} {
  func.func @kernel(%arg0: i32, %arg1: i32, %arg2: memref<1x19x128xf32, #tpu.memory_space<vmem>>, %arg3: memref<1x16x128xf32, #tpu.memory_space<vmem>>, %arg4: memref<384x128xf32, #tpu.memory_space<vmem>>, %arg5: memref<384x128xf32, #tpu.memory_space<vmem>>, %arg6: memref<128x128xf32, #tpu.memory_space<vmem>>, %arg7: memref<1x128xf32, #tpu.memory_space<vmem>>, %arg8: memref<1x128xf32, #tpu.memory_space<vmem>>, %arg9: memref<1x128xf32, #tpu.memory_space<vmem>>, %arg10: memref<1x128xf32, #tpu.memory_space<vmem>>, %arg11: memref<1x8x128xf32, #tpu.memory_space<vmem>>, %arg12: memref<1x8x128xf32, #tpu.memory_space<vmem>>, %arg13: memref<17x128xf32, #tpu.memory_space<vmem>>) attributes {dimension_semantics = [#tpu.dimension_semantics<parallel>, #tpu.dimension_semantics<parallel>], iteration_bounds = array<i64: 2, 1>, scalar_prefetch = 0 : i64, scratch_operands = 1 : i64, tpu.core_type = #tpu.core_type<tc>, window_params = [{transform_indices = @transform_0, window_bounds = array<i64: 1, 19, 128>}, {transform_indices = @transform_1, window_bounds = array<i64: 1, 16, 128>}, {pipeline_mode = #tpu.pipeline_mode<synchronous>, transform_indices = @transform_2, window_bounds = array<i64: 384, 128>}, {pipeline_mode = #tpu.pipeline_mode<synchronous>, transform_indices = @transform_3, window_bounds = array<i64: 384, 128>}, {pipeline_mode = #tpu.pipeline_mode<synchronous>, transform_indices = @transform_4, window_bounds = array<i64: 128, 128>}, {pipeline_mode = #tpu.pipeline_mode<synchronous>, transform_indices = @transform_5, window_bounds = array<i64: 1, 128>}, {pipeline_mode = #tpu.pipeline_mode<synchronous>, transform_indices = @transform_6, window_bounds = array<i64: 1, 128>}, {pipeline_mode = #tpu.pipeline_mode<synchronous>, transform_indices = @transform_7, window_bounds = array<i64: 1, 128>}, {pipeline_mode = #tpu.pipeline_mode<synchronous>, transform_indices = @transform_8, window_bounds = array<i64: 1, 128>}, {transform_indices = @transform_9, window_bounds = array<i64: 1, 8, 128>}, {transform_indices = @transform_10, window_bounds = array<i64: 1, 8, 128>}]} {
    %c0 = arith.constant 0 : index
    %c0_0 = arith.constant 0 : index
    %c0_1 = arith.constant 0 : index
    %0 = vector.load %arg2[%c0, %c0_0, %c0_1] : memref<1x19x128xf32, #tpu.memory_space<vmem>>, vector<1x17x128xf32>
    %1 = vector.shape_cast %0 : vector<1x17x128xf32> to vector<17x128xf32>
    %c0_2 = arith.constant 0 : index
    %c1 = arith.constant 1 : index
    %c0_3 = arith.constant 0 : index
    %2 = vector.load %arg2[%c0_2, %c1, %c0_3] : memref<1x19x128xf32, #tpu.memory_space<vmem>>, vector<1x17x128xf32>
    %3 = vector.shape_cast %2 : vector<1x17x128xf32> to vector<17x128xf32>
    %c0_4 = arith.constant 0 : index
    %c2 = arith.constant 2 : index
    %c0_5 = arith.constant 0 : index
    %4 = vector.load %arg2[%c0_4, %c2, %c0_5] : memref<1x19x128xf32, #tpu.memory_space<vmem>>, vector<1x17x128xf32>
    %5 = vector.shape_cast %4 : vector<1x17x128xf32> to vector<17x128xf32>
    %6 = tpu.concatenate %1, %3, %5 in 1 : vector<17x128xf32>, vector<17x128xf32>, vector<17x128xf32> -> vector<17x384xf32>
    %c0_6 = arith.constant 0 : index
    %c0_7 = arith.constant 0 : index
    %7 = vector.load %arg4[%c0_6, %c0_7] : memref<384x128xf32, #tpu.memory_space<vmem>>, vector<384x128xf32>
    %cst = arith.constant dense<0.000000e+00> : vector<17x128xf32>
    %8 = tpu.matmul %6, %7, %cst {dimension_numbers = #tpu.dot_dimension_numbers<[1], [0], [0], [1], [0, 0, 1, 1], [], []>} : vector<17x384xf32>, vector<384x128xf32>, vector<17x128xf32> -> vector<17x128xf32>
    %c0_8 = arith.constant 0 : index
    %c0_9 = arith.constant 0 : index
    %9 = vector.load %arg7[%c0_8, %c0_9] : memref<1x128xf32, #tpu.memory_space<vmem>>, vector<1x128xf32>
    %10 = vector.broadcast %9 : vector<1x128xf32> to vector<17x128xf32>
    %11 = arith.mulf %8, %10 : vector<17x128xf32>
    %c0_10 = arith.constant 0 : index
    %c0_11 = arith.constant 0 : index
    %12 = vector.load %arg8[%c0_10, %c0_11] : memref<1x128xf32, #tpu.memory_space<vmem>>, vector<1x128xf32>
    %13 = vector.broadcast %12 : vector<1x128xf32> to vector<17x128xf32>
    %14 = arith.addf %11, %13 : vector<17x128xf32>
    %cst_12 = arith.constant 0.000000e+00 : f32
    %15 = vector.broadcast %cst_12 : f32 to vector<17x128xf32>
    %16 = arith.maximumf %14, %15 : vector<17x128xf32>
    %c16_i32 = arith.constant 16 : i32
    %17 = arith.muli %arg1, %c16_i32 : i32
    %c1_i32 = arith.constant 1 : i32
    %18 = arith.subi %17, %c1_i32 : i32
    %19 = tpu.iota {dimensions = array<i32: 0>} : vector<17x1xi32>
    %20 = vector.broadcast %18 : i32 to vector<17x1xi32>
    %21 = arith.addi %20, %19 : vector<17x1xi32>
    %c0_i32 = arith.constant 0 : i32
    %22 = vector.broadcast %c0_i32 : i32 to vector<17x1xi32>
    %23 = arith.cmpi sge, %21, %22 : vector<17x1xi32>
    %c16_i32_13 = arith.constant 16 : i32
    %24 = vector.broadcast %c16_i32_13 : i32 to vector<17x1xi32>
    %25 = arith.cmpi slt, %21, %24 : vector<17x1xi32>
    %26 = arith.andi %23, %25 : vector<17x1xi1>
    %cst_14 = arith.constant 0.000000e+00 : f32
    %27 = vector.shape_cast %26 : vector<17x1xi1> to vector<17x1xi1>
    %28 = vector.broadcast %27 : vector<17x1xi1> to vector<17x128xi1>
    %29 = vector.broadcast %cst_14 : f32 to vector<17x128xf32>
    %30 = arith.select %28, %16, %29 : vector<17x128xi1>, vector<17x128xf32>
    %c0_15 = arith.constant 0 : index
    %c0_16 = arith.constant 0 : index
    %31 = vector.load %arg13[%c0_15, %c0_16] : memref<17x128xf32, #tpu.memory_space<vmem>>, vector<17x128xf32>
    tpu.vector_store %arg13[%c0_15, %c0_16], %30 {strides = array<i32>} : memref<17x128xf32, #tpu.memory_space<vmem>>, vector<17x128xf32>,
    %c0_17 = arith.constant 0 : index
    %c0_18 = arith.constant 0 : index
    %32 = tpu.strided_load %arg13[%c0_17, %c0_18] {strides = array<i32: 2, 1>} : memref<17x128xf32, #tpu.memory_space<vmem>>, vector<8x128xf32>
    %c1_19 = arith.constant 1 : index
    %c0_20 = arith.constant 0 : index
    %33 = tpu.strided_load %arg13[%c1_19, %c0_20] {strides = array<i32: 2, 1>} : memref<17x128xf32, #tpu.memory_space<vmem>>, vector<8x128xf32>
    %c2_21 = arith.constant 2 : index
    %c0_22 = arith.constant 0 : index
    %34 = tpu.strided_load %arg13[%c2_21, %c0_22] {strides = array<i32: 2, 1>} : memref<17x128xf32, #tpu.memory_space<vmem>>, vector<8x128xf32>
    %35 = tpu.concatenate %32, %33, %34 in 1 : vector<8x128xf32>, vector<8x128xf32>, vector<8x128xf32> -> vector<8x384xf32>
    %c0_23 = arith.constant 0 : index
    %c0_24 = arith.constant 0 : index
    %36 = vector.load %arg5[%c0_23, %c0_24] : memref<384x128xf32, #tpu.memory_space<vmem>>, vector<384x128xf32>
    %cst_25 = arith.constant dense<0.000000e+00> : vector<8x128xf32>
    %37 = tpu.matmul %35, %36, %cst_25 {dimension_numbers = #tpu.dot_dimension_numbers<[1], [0], [0], [1], [0, 0, 1, 1], [], []>} : vector<8x384xf32>, vector<384x128xf32>, vector<8x128xf32> -> vector<8x128xf32>
    %c0_26 = arith.constant 0 : index
    %c0_27 = arith.constant 0 : index
    %c0_28 = arith.constant 0 : index
    %38 = tpu.strided_load %arg3[%c0_26, %c0_27, %c0_28] {strides = array<i32: 1, 2, 1>} : memref<1x16x128xf32, #tpu.memory_space<vmem>>, vector<1x8x128xf32>
    %39 = vector.shape_cast %38 : vector<1x8x128xf32> to vector<8x128xf32>
    %c0_29 = arith.constant 0 : index
    %c1_30 = arith.constant 1 : index
    %c0_31 = arith.constant 0 : index
    %40 = tpu.strided_load %arg3[%c0_29, %c1_30, %c0_31] {strides = array<i32: 1, 2, 1>} : memref<1x16x128xf32, #tpu.memory_space<vmem>>, vector<1x8x128xf32>
    %41 = vector.shape_cast %40 : vector<1x8x128xf32> to vector<8x128xf32>
    %42 = arith.maximumf %39, %41 : vector<8x128xf32>
    %c0_32 = arith.constant 0 : index
    %c0_33 = arith.constant 0 : index
    %43 = vector.load %arg6[%c0_32, %c0_33] : memref<128x128xf32, #tpu.memory_space<vmem>>, vector<128x128xf32>
    %cst_34 = arith.constant dense<0.000000e+00> : vector<8x128xf32>
    %44 = tpu.matmul %42, %43, %cst_34 {dimension_numbers = #tpu.dot_dimension_numbers<[1], [0], [0], [1], [0, 0, 1, 1], [], []>} : vector<8x128xf32>, vector<128x128xf32>, vector<8x128xf32> -> vector<8x128xf32>
    %45 = arith.addf %37, %44 : vector<8x128xf32>
    %c0_35 = arith.constant 0 : index
    %c0_36 = arith.constant 0 : index
    %c0_37 = arith.constant 0 : index
    %46 = vector.load %arg12[%c0_35, %c0_36, %c0_37] : memref<1x8x128xf32, #tpu.memory_space<vmem>>, vector<1x8x128xf32>
    %47 = vector.shape_cast %46 : vector<1x8x128xf32> to vector<8x128xf32>
    %48 = vector.shape_cast %45 : vector<8x128xf32> to vector<1x8x128xf32>
    tpu.vector_store %arg12[%c0_35, %c0_36, %c0_37], %48 {strides = array<i32>} : memref<1x8x128xf32, #tpu.memory_space<vmem>>, vector<1x8x128xf32>,
    %c0_38 = arith.constant 0 : index
    %c0_39 = arith.constant 0 : index
    %49 = vector.load %arg9[%c0_38, %c0_39] : memref<1x128xf32, #tpu.memory_space<vmem>>, vector<1x128xf32>
    %50 = vector.broadcast %49 : vector<1x128xf32> to vector<8x128xf32>
    %51 = arith.mulf %45, %50 : vector<8x128xf32>
    %c0_40 = arith.constant 0 : index
    %c0_41 = arith.constant 0 : index
    %52 = vector.load %arg10[%c0_40, %c0_41] : memref<1x128xf32, #tpu.memory_space<vmem>>, vector<1x128xf32>
    %53 = vector.broadcast %52 : vector<1x128xf32> to vector<8x128xf32>
    %54 = arith.addf %51, %53 : vector<8x128xf32>
    %cst_42 = arith.constant 0.000000e+00 : f32
    %55 = vector.broadcast %cst_42 : f32 to vector<8x128xf32>
    %56 = arith.maximumf %54, %55 : vector<8x128xf32>
    %c0_43 = arith.constant 0 : index
    %c0_44 = arith.constant 0 : index
    %c0_45 = arith.constant 0 : index
    %57 = vector.load %arg11[%c0_43, %c0_44, %c0_45] : memref<1x8x128xf32, #tpu.memory_space<vmem>>, vector<1x8x128xf32>
    %58 = vector.shape_cast %57 : vector<1x8x128xf32> to vector<8x128xf32>
    %59 = vector.shape_cast %56 : vector<8x128xf32> to vector<1x8x128xf32>
    tpu.vector_store %arg11[%c0_43, %c0_44, %c0_45], %59 {strides = array<i32>} : memref<1x8x128xf32, #tpu.memory_space<vmem>>, vector<1x8x128xf32>,
    return
  }
  func.func @transform_0(%arg0: i32, %arg1: i32) -> (i32, i32, i32) {
    %c1_i32 = arith.constant 1 : i32
    %0 = arith.muli %arg0, %c1_i32 : i32
    %1 = arith.addi %0, %arg1 : i32
    %c0_i32 = arith.constant 0 : i32
    %c0_i32_0 = arith.constant 0 : i32
    %c0_i32_1 = arith.constant 0 : i32
    return %1, %c0_i32, %c0_i32_0 : i32, i32, i32
  }
  func.func @transform_1(%arg0: i32, %arg1: i32) -> (i32, i32, i32) {
    %c0_i32 = arith.constant 0 : i32
    %c0_i32_0 = arith.constant 0 : i32
    return %arg0, %arg1, %c0_i32 : i32, i32, i32
  }
  func.func @transform_2(%arg0: i32, %arg1: i32) -> (i32, i32) {
    %c0_i32 = arith.constant 0 : i32
    %c0_i32_0 = arith.constant 0 : i32
    %c0_i32_1 = arith.constant 0 : i32
    return %c0_i32, %c0_i32_0 : i32, i32
  }
  func.func @transform_3(%arg0: i32, %arg1: i32) -> (i32, i32) {
    %c0_i32 = arith.constant 0 : i32
    %c0_i32_0 = arith.constant 0 : i32
    %c0_i32_1 = arith.constant 0 : i32
    return %c0_i32, %c0_i32_0 : i32, i32
  }
  func.func @transform_4(%arg0: i32, %arg1: i32) -> (i32, i32) {
    %c0_i32 = arith.constant 0 : i32
    %c0_i32_0 = arith.constant 0 : i32
    %c0_i32_1 = arith.constant 0 : i32
    return %c0_i32, %c0_i32_0 : i32, i32
  }
  func.func @transform_5(%arg0: i32, %arg1: i32) -> (i32, i32) {
    %c0_i32 = arith.constant 0 : i32
    %c0_i32_0 = arith.constant 0 : i32
    %c0_i32_1 = arith.constant 0 : i32
    return %c0_i32, %c0_i32_0 : i32, i32
  }
  func.func @transform_6(%arg0: i32, %arg1: i32) -> (i32, i32) {
    %c0_i32 = arith.constant 0 : i32
    %c0_i32_0 = arith.constant 0 : i32
    %c0_i32_1 = arith.constant 0 : i32
    return %c0_i32, %c0_i32_0 : i32, i32
  }
  func.func @transform_7(%arg0: i32, %arg1: i32) -> (i32, i32) {
    %c0_i32 = arith.constant 0 : i32
    %c0_i32_0 = arith.constant 0 : i32
    %c0_i32_1 = arith.constant 0 : i32
    return %c0_i32, %c0_i32_0 : i32, i32
  }
  func.func @transform_8(%arg0: i32, %arg1: i32) -> (i32, i32) {
    %c0_i32 = arith.constant 0 : i32
    %c0_i32_0 = arith.constant 0 : i32
    %c0_i32_1 = arith.constant 0 : i32
    return %c0_i32, %c0_i32_0 : i32, i32
  }
  func.func @transform_9(%arg0: i32, %arg1: i32) -> (i32, i32, i32) {
    %c0_i32 = arith.constant 0 : i32
    %c0_i32_0 = arith.constant 0 : i32
    return %arg0, %arg1, %c0_i32 : i32, i32, i32
  }
  func.func @transform_10(%arg0: i32, %arg1: i32) -> (i32, i32, i32) {
    %c0_i32 = arith.constant 0 : i32
    %c0_i32_0 = arith.constant 0 : i32
    return %arg0, %arg1, %c0_i32 : i32, i32, i32
  }
}

</mosaic_0001>

<llo_original>
// kernel: tpu_custom_call.1
$region0: #{tpu_custom_call.1}
  #allocation0 [shape = 'u32[]', space=smem, size = 0x4, offset = 0x4, fixed_abs, tag = 'smem constant byte address 0x4 - core index']
  #allocation1 [shape = 'u32[144,128]{1,0:T(1,128)}', space=vmem, size = 0x12000, scoped, tag = 'internal scratch']
  #allocation2 [shape = 'f32[17,128]{1,0:T(8,128)}', space=vmem, size = 0x3000, scoped, tag = 'scratch operand']
  %s0 = inlined_call_operand.vmem [shape: f32[2,19,128], index: 0, kind: input, shape index: {}]
  %s1 = inlined_call_operand.vmem [shape: f32[2,16,128], index: 1, kind: input, shape index: {}]
  %s2 = inlined_call_operand.hbm [shape: f32[384,128], index: 2, kind: input, shape index: {}]
  %s3 = inlined_call_operand.hbm [shape: f32[384,128], index: 3, kind: input, shape index: {}]
  %s4 = inlined_call_operand.hbm [shape: f32[128,128], index: 4, kind: input, shape index: {}]
  %s5 = inlined_call_operand.vmem [shape: f32[1,128], index: 5, kind: input, shape index: {}]
  %s6 = inlined_call_operand.vmem [shape: f32[1,128], index: 6, kind: input, shape index: {}]
  %s7 = inlined_call_operand.vmem [shape: f32[1,128], index: 7, kind: input, shape index: {}]
  %s8 = inlined_call_operand.vmem [shape: f32[1,128], index: 8, kind: input, shape index: {}]
  %s9 = inlined_call_operand.hbm [shape: f32[2,8,128], index: 9, kind: output, shape index: {0}]
  %s10 = inlined_call_operand.hbm [shape: f32[2,8,128], index: 10, kind: output, shape index: {1}]
  %11 = xla_tuple %s9, %s10
  %s12 = sld [smem:[#allocation0]]
  $region89: #{tpu_custom_call.1} parent=0
    _
  %s14 = ssub.s32 1, %s12
  %s15 = scalar_select 0, %s14, %s12
  $region1: #{tpu_custom_call.1} parent=0
    #allocation3 [shape = 'u8[196608]{0}', space=vmem, size = 0x30000, scoped, tag = 'input window, operand 2, single buffered']
    #allocation4 [shape = 's32[2]{0}', space=sflag, size = 0x8, scoped, tag = 'scoped memory for tpu_custom_call.1']
    #allocation5 [shape = 's32[2]{0}', space=sflag, size = 0x8, scoped, tag = 'scoped memory for tpu_custom_call.1']
    #allocation6 [shape = 'u8[196608]{0}', space=vmem, size = 0x30000, scoped, tag = 'input window, operand 3, single buffered']
    #allocation7 [shape = 's32[1]{0}', space=sflag, size = 0x4, scoped, tag = 'scoped memory for tpu_custom_call.1']
    #allocation8 [shape = 'u8[65536]{0}', space=vmem, size = 0x10000, scoped, tag = 'input window, operand 4, single buffered']
    #allocation9 [shape = 'u8[8192]{0}', space=vmem, size = 0x2000, scoped, tag = 'output window, operand 0']
    #allocation10 [shape = 'u8[8192]{0}', space=vmem, size = 0x2000, scoped, tag = 'output window, operand 1']
    #allocation11 [shape = 's32[2]{0}', space=sflag, size = 0x8, scoped, tag = 'scoped memory for tpu_custom_call.1']
    %16 = vsyncpa [#allocation4], 0
    %17 = vsyncpa [#allocation7], 0
    %18 = vsyncpa [#allocation5], 0
    %s19 = scalar_lea.sflag [#allocation5], 1
    %20 = vsyncpa %s19, 0
    %21 = vsyncpa [#allocation11], 0
    %s22 = scalar_lea.sflag [#allocation11], 1
    %23 = vsyncpa %s22, 0
    loop: start=0, step=1, limit=4
    $region2: #{tpu_custom_call.1} parent=1 // loop_pre_header
      _
    $region3: #{tpu_custom_call.1} parent=1 // loop_header
      %s25 = sphi 0, %s29
      %p26 = scmp.ge.s32.totalorder %s25, 4
      %s32 = sphi 0, %s44
      %s33 = sphi 0, %s40
      %s34 = sphi 0, %s32
      %s35 = sphi 0, %s33
      %s36 = sphi 0, %s34
      %s37 = sphi 0, %s35
      %s49 = sphi 0, %s51
      %s52 = sphi 0, %s49
      %s53 = sphi 0, %s52
      %s69 = sphi 0, %s53
      %s77 = sphi 0, %s79
      %s80 = sphi 0, %s77
      %s81 = sphi 0, %s80
      %s97 = sphi 0, %s81
      %s101 = sphi 0, %s101
      %s103 = sphi 0, %s101
      %s104 = sphi 0, %s103
      %s118 = sphi 0, %s104
      %s122 = sphi 0, %s122
      %s124 = sphi 0, %s122
      %s125 = sphi 0, %s124
      %s139 = sphi 0, %s125
      %s143 = sphi 0, %s143
      %s145 = sphi 0, %s143
      %s146 = sphi 0, %s145
      %s160 = sphi 0, %s146
      %s164 = sphi 0, %s164
      %s166 = sphi 0, %s164
      %s167 = sphi 0, %s166
      %s181 = sphi 0, %s167
      %s185 = sphi 0, %s185
      %s187 = sphi 0, %s185
      %s188 = sphi 0, %s187
      %s202 = sphi 0, %s188
      %s206 = sphi 0, %s206
      %s208 = sphi 0, %s206
      %s209 = sphi 0, %s208
      %s223 = sphi 0, %s209
      %s227 = sphi 0, %s227
      %s229 = sphi 0, %s227
      %s230 = sphi 0, %s229
      %s244 = sphi 0, %s230
      %s252 = sphi 0, %s254
      %s255 = sphi 0, %s252
      %s256 = sphi 0, %s255
      %s272 = sphi 0, %s256
      %s280 = sphi 0, %s282
      %s283 = sphi 0, %s280
      %s284 = sphi 0, %s283
      %s300 = sphi 0, %s284
    $region4: #{tpu_custom_call.1} parent=1 // loop_header_branch
      %28 = sbr.rel (%p26) target = $region8
    $region5: #{tpu_custom_call.1} parent=1 // loop_body
      %s30 = ssub.s32 %s25, 1
      %s31 = ssub.s32 %s25, 2
      %s38 = sadd.s32 1, %s33
      %p39 = scmp.ge.s32.totalorder %s38, 1
      %s40 = scalar_select %p39, 0, %s38
      %s41 = sadd.s32 1, %s32
      %s42 = scalar_select %p39, %s41, %s32
      %p43 = scmp.ge.s32.totalorder %s42, 2
      %s44 = scalar_select %p43, 0, %s42
      %s45 = sadd.s32 %s32, %s33
      %s46 = sadd.s32 %s44, %s40
      %s47 = ssub.s32 %s45, %s46
      %p48 = scmp.eq.s32.totalorder %s47, 0
      %s50 = sadd.s32 %s49, 1
      %s51 = scalar_select %p48, %s49, %s50
      %p54 = pneg %p48
      %p55 = scmp.eq.s32.totalorder %s25, 1
      %p56 = por %p54, %p55
      %p57 = scmp.ne.s32.totalorder %s49, %s52
      %p58 = scmp.eq.s32.totalorder %s25, 0
      %p59 = por %p57, %p58
      %p60 = scmp.ne.s32.totalorder %s49, %s52
      %p61 = scmp.eq.s32.totalorder %s30, 1
      %p62 = por %p60, %p61
      %p63 = scmp.ne.s32.totalorder %s52, %s53
      %p64 = scmp.eq.s32.totalorder %s30, 0
      %p65 = por %p63, %p64
      %p66 = scmp.ne.s32.totalorder %s52, %s53
      %p67 = scmp.eq.s32.totalorder %s31, 1
      %p68 = por %p66, %p67
      %p70 = scmp.ne.s32.totalorder %s53, %s69
      %p71 = scmp.eq.s32.totalorder %s31, 0
      %p72 = por %p70, %p71
      %s73 = ssub.s32 %s32, %s44
      %s74 = ssub.s32 %s33, %s40
      %s75 = sor.u32 %s73, %s74
      %p76 = scmp.eq.s32.totalorder %s75, 0
      %s78 = sadd.s32 %s77, 1
      %s79 = scalar_select %p76, %s77, %s78
      %p82 = pneg %p76
      %p83 = scmp.eq.s32.totalorder %s25, 1
      %p84 = por %p82, %p83
      %p85 = scmp.ne.s32.totalorder %s77, %s80
      %p86 = scmp.eq.s32.totalorder %s25, 0
      %p87 = por %p85, %p86
      %p88 = scmp.ne.s32.totalorder %s77, %s80
      %p89 = scmp.eq.s32.totalorder %s30, 1
      %p90 = por %p88, %p89
      %p91 = scmp.ne.s32.totalorder %s80, %s81
      %p92 = scmp.eq.s32.totalorder %s30, 0
      %p93 = por %p91, %p92
      %p94 = scmp.ne.s32.totalorder %s80, %s81
      %p95 = scmp.eq.s32.totalorder %s31, 1
      %p96 = por %p94, %p95
      %p98 = scmp.ne.s32.totalorder %s81, %s97
      %p99 = scmp.eq.s32.totalorder %s31, 0
      %p100 = por %p98, %p99
      %s102 = sadd.s32 %s101, 1
      %p105 = scmp.eq.s32.totalorder %s25, 1
      %p106 = scmp.ne.s32.totalorder %s101, %s103
      %p107 = scmp.eq.s32.totalorder %s25, 0
      %p108 = por %p106, %p107
      %p109 = scmp.ne.s32.totalorder %s101, %s103
      %p110 = scmp.eq.s32.totalorder %s30, 1
      %p111 = por %p109, %p110
      %p112 = scmp.ne.s32.totalorder %s103, %s104
      %p113 = scmp.eq.s32.totalorder %s30, 0
      %p114 = por %p112, %p113
      %p115 = scmp.ne.s32.totalorder %s103, %s104
      %p116 = scmp.eq.s32.totalorder %s31, 1
      %p117 = por %p115, %p116
      %p119 = scmp.ne.s32.totalorder %s104, %s118
      %p120 = scmp.eq.s32.totalorder %s31, 0
      %p121 = por %p119, %p120
      %s123 = sadd.s32 %s122, 1
      %p126 = scmp.eq.s32.totalorder %s25, 1
      %p127 = scmp.ne.s32.totalorder %s122, %s124
      %p128 = scmp.eq.s32.totalorder %s25, 0
      %p129 = por %p127, %p128
      %p130 = scmp.ne.s32.totalorder %s122, %s124
      %p131 = scmp.eq.s32.totalorder %s30, 1
      %p132 = por %p130, %p131
      %p133 = scmp.ne.s32.totalorder %s124, %s125
      %p134 = scmp.eq.s32.totalorder %s30, 0
      %p135 = por %p133, %p134
      %p136 = scmp.ne.s32.totalorder %s124, %s125
      %p137 = scmp.eq.s32.totalorder %s31, 1
      %p138 = por %p136, %p137
      %p140 = scmp.ne.s32.totalorder %s125, %s139
      %p141 = scmp.eq.s32.totalorder %s31, 0
      %p142 = por %p140, %p141
      %s144 = sadd.s32 %s143, 1
      %p147 = scmp.eq.s32.totalorder %s25, 1
      %p148 = scmp.ne.s32.totalorder %s143, %s145
      %p149 = scmp.eq.s32.totalorder %s25, 0
      %p150 = por %p148, %p149
      %p151 = scmp.ne.s32.totalorder %s143, %s145
      %p152 = scmp.eq.s32.totalorder %s30, 1
      %p153 = por %p151, %p152
      %p154 = scmp.ne.s32.totalorder %s145, %s146
      %p155 = scmp.eq.s32.totalorder %s30, 0
      %p156 = por %p154, %p155
      %p157 = scmp.ne.s32.totalorder %s145, %s146
      %p158 = scmp.eq.s32.totalorder %s31, 1
      %p159 = por %p157, %p158
      %p161 = scmp.ne.s32.totalorder %s146, %s160
      %p162 = scmp.eq.s32.totalorder %s31, 0
      %p163 = por %p161, %p162
      %s165 = sadd.s32 %s164, 1
      %p168 = scmp.eq.s32.totalorder %s25, 1
      %p169 = scmp.ne.s32.totalorder %s164, %s166
      %p170 = scmp.eq.s32.totalorder %s25, 0
      %p171 = por %p169, %p170
      %p172 = scmp.ne.s32.totalorder %s164, %s166
      %p173 = scmp.eq.s32.totalorder %s30, 1
      %p174 = por %p172, %p173
      %p175 = scmp.ne.s32.totalorder %s166, %s167
      %p176 = scmp.eq.s32.totalorder %s30, 0
      %p177 = por %p175, %p176
      %p178 = scmp.ne.s32.totalorder %s166, %s167
      %p179 = scmp.eq.s32.totalorder %s31, 1
      %p180 = por %p178, %p179
      %p182 = scmp.ne.s32.totalorder %s167, %s181
      %p183 = scmp.eq.s32.totalorder %s31, 0
      %p184 = por %p182, %p183
      %s186 = sadd.s32 %s185, 1
      %p189 = scmp.eq.s32.totalorder %s25, 1
      %p190 = scmp.ne.s32.totalorder %s185, %s187
      %p191 = scmp.eq.s32.totalorder %s25, 0
      %p192 = por %p190, %p191
      %p193 = scmp.ne.s32.totalorder %s185, %s187
      %p194 = scmp.eq.s32.totalorder %s30, 1
      %p195 = por %p193, %p194
      %p196 = scmp.ne.s32.totalorder %s187, %s188
      %p197 = scmp.eq.s32.totalorder %s30, 0
      %p198 = por %p196, %p197
      %p199 = scmp.ne.s32.totalorder %s187, %s188
      %p200 = scmp.eq.s32.totalorder %s31, 1
      %p201 = por %p199, %p200
      %p203 = scmp.ne.s32.totalorder %s188, %s202
      %p204 = scmp.eq.s32.totalorder %s31, 0
      %p205 = por %p203, %p204
      %s207 = sadd.s32 %s206, 1
      %p210 = scmp.eq.s32.totalorder %s25, 1
      %p211 = scmp.ne.s32.totalorder %s206, %s208
      %p212 = scmp.eq.s32.totalorder %s25, 0
      %p213 = por %p211, %p212
      %p214 = scmp.ne.s32.totalorder %s206, %s208
      %p215 = scmp.eq.s32.totalorder %s30, 1
      %p216 = por %p214, %p215
      %p217 = scmp.ne.s32.totalorder %s208, %s209
      %p218 = scmp.eq.s32.totalorder %s30, 0
      %p219 = por %p217, %p218
      %p220 = scmp.ne.s32.totalorder %s208, %s209
      %p221 = scmp.eq.s32.totalorder %s31, 1
      %p222 = por %p220, %p221
      %p224 = scmp.ne.s32.totalorder %s209, %s223
      %p225 = scmp.eq.s32.totalorder %s31, 0
      %p226 = por %p224, %p225
      %s228 = sadd.s32 %s227, 1
      %p231 = scmp.eq.s32.totalorder %s25, 1
      %p232 = scmp.ne.s32.totalorder %s227, %s229
      %p233 = scmp.eq.s32.totalorder %s25, 0
      %p234 = por %p232, %p233
      %p235 = scmp.ne.s32.totalorder %s227, %s229
      %p236 = scmp.eq.s32.totalorder %s30, 1
      %p237 = por %p235, %p236
      %p238 = scmp.ne.s32.totalorder %s229, %s230
      %p239 = scmp.eq.s32.totalorder %s30, 0
      %p240 = por %p238, %p239
      %p241 = scmp.ne.s32.totalorder %s229, %s230
      %p242 = scmp.eq.s32.totalorder %s31, 1
      %p243 = por %p241, %p242
      %p245 = scmp.ne.s32.totalorder %s230, %s244
      %p246 = scmp.eq.s32.totalorder %s31, 0
      %p247 = por %p245, %p246
      %s248 = ssub.s32 %s32, %s44
      %s249 = ssub.s32 %s33, %s40
      %s250 = sor.u32 %s248, %s249
      %p251 = scmp.eq.s32.totalorder %s250, 0
      %s253 = sadd.s32 %s252, 1
      %s254 = scalar_select %p251, %s252, %s253
      %p257 = pneg %p251
      %p258 = scmp.eq.s32.totalorder %s25, 1
      %p259 = por %p257, %p258
      %p260 = scmp.ne.s32.totalorder %s252, %s255
      %p261 = scmp.eq.s32.totalorder %s25, 0
      %p262 = por %p260, %p261
      %p263 = scmp.ne.s32.totalorder %s252, %s255
      %p264 = scmp.eq.s32.totalorder %s30, 1
      %p265 = por %p263, %p264
      %p266 = scmp.ne.s32.totalorder %s255, %s256
      %p267 = scmp.eq.s32.totalorder %s30, 0
      %p268 = por %p266, %p267
      %p269 = scmp.ne.s32.totalorder %s255, %s256
      %p270 = scmp.eq.s32.totalorder %s31, 1
      %p271 = por %p269, %p270
      %p273 = scmp.ne.s32.totalorder %s256, %s272
      %p274 = scmp.eq.s32.totalorder %s31, 0
      %p275 = por %p273, %p274
      %s276 = ssub.s32 %s32, %s44
      %s277 = ssub.s32 %s33, %s40
      %s278 = sor.u32 %s276, %s277
      %p279 = scmp.eq.s32.totalorder %s278, 0
      %s281 = sadd.s32 %s280, 1
      %s282 = scalar_select %p279, %s280, %s281
      %p285 = pneg %p279
      %p286 = scmp.eq.s32.totalorder %s25, 1
      %p287 = por %p285, %p286
      %p288 = scmp.ne.s32.totalorder %s280, %s283
      %p289 = scmp.eq.s32.totalorder %s25, 0
      %p290 = por %p288, %p289
      %p291 = scmp.ne.s32.totalorder %s280, %s283
      %p292 = scmp.eq.s32.totalorder %s30, 1
      %p293 = por %p291, %p292
      %p294 = scmp.ne.s32.totalorder %s283, %s284
      %p295 = scmp.eq.s32.totalorder %s30, 0
      %p296 = por %p294, %p295
      %p297 = scmp.ne.s32.totalorder %s283, %s284
      %p298 = scmp.eq.s32.totalorder %s31, 1
      %p299 = por %p297, %p298
      %p301 = scmp.ne.s32.totalorder %s284, %s300
      %p302 = scmp.eq.s32.totalorder %s31, 0
      %p303 = por %p301, %p302
      %p304 = scmp.le.s32.totalorder 1, %s25
      %p305 = scmp.lt.s32.totalorder %s25, 3
      %p306 = pnand %p304, %p305
      %p307 = pneg %p306
      // Predicated region
      $region9: #{tpu_custom_call.1} parent=5 // pred_check
        _
      $region10: #{tpu_custom_call.1} parent=5 // pred_check_branch
        %309 = sbr.rel (%p306) target = $region12
      $region11: #{tpu_custom_call.1} parent=5 // pred_region
        %s310 = ssub.s32 %s25, 1
        // Predicated region
        $region13: #{tpu_custom_call.1} parent=11 // pred_check
          %p311 = pneg %p114
        $region14: #{tpu_custom_call.1} parent=11 // pred_check_branch
          %313 = sbr.rel (%p311) target = $region16
        $region15: #{tpu_custom_call.1} parent=11 // pred_region
          %s315 = ssub.s32 6144, 6144
          %316 = vsyncadd [#allocation4], %s315
          %s317 = sshll.u32 [#allocation3], 4
          %s318 = int_to_ptr.vmem [resolvable:$true] %s317
          %323 = dma.hbm_to_vmem [thread:$0]  %s2, 6144, %s318, [#allocation4], 128, 128, 8
        $region16: #{tpu_custom_call.1} parent=11 // pred_fallthru
          _
        // Predicated region
        $region17: #{tpu_custom_call.1} parent=11 // pred_check
          %p324 = pneg %p135
        $region18: #{tpu_custom_call.1} parent=11 // pred_check_branch
          %326 = sbr.rel (%p324) target = $region20
        $region19: #{tpu_custom_call.1} parent=11 // pred_region
          %s328 = ssub.s32 6144, 6144
          %329 = vsyncadd [#allocation7], %s328
          %s330 = sshll.u32 [#allocation6], 4
          %s331 = int_to_ptr.vmem [resolvable:$true] %s330
          %336 = dma.hbm_to_vmem [thread:$0]  %s3, 6144, %s331, [#allocation7], 128, 128, 8
        $region20: #{tpu_custom_call.1} parent=11 // pred_fallthru
          _
        // Predicated region
        $region21: #{tpu_custom_call.1} parent=11 // pred_check
          %p337 = pneg %p156
        $region22: #{tpu_custom_call.1} parent=11 // pred_check_branch
          %339 = sbr.rel (%p337) target = $region24
        $region23: #{tpu_custom_call.1} parent=11 // pred_region
          %s341 = ssub.s32 2048, 2048
          %342 = vsyncadd [#allocation7], %s341
          %s343 = sshll.u32 [#allocation8], 4
          %s344 = int_to_ptr.vmem [resolvable:$true] %s343
          %349 = dma.hbm_to_vmem [thread:$0]  %s4, 2048, %s344, [#allocation7], 128, 128, 8
        $region24: #{tpu_custom_call.1} parent=11 // pred_fallthru
          _
        // Predicated region
        $region25: #{tpu_custom_call.1} parent=11 // pred_check
          %p350 = pneg %p177
        $region26: #{tpu_custom_call.1} parent=11 // pred_check_branch
          %352 = sbr.rel (%p350) target = $region28
        $region27: #{tpu_custom_call.1} parent=11 // pred_region
          _
        $region28: #{tpu_custom_call.1} parent=11 // pred_fallthru
          _
        // Predicated region
        $region29: #{tpu_custom_call.1} parent=11 // pred_check
          %p353 = pneg %p198
        $region30: #{tpu_custom_call.1} parent=11 // pred_check_branch
          %355 = sbr.rel (%p353) target = $region32
        $region31: #{tpu_custom_call.1} parent=11 // pred_region
          _
        $region32: #{tpu_custom_call.1} parent=11 // pred_fallthru
          _
        // Predicated region
        $region33: #{tpu_custom_call.1} parent=11 // pred_check
          %p356 = pneg %p219
        $region34: #{tpu_custom_call.1} parent=11 // pred_check_branch
          %358 = sbr.rel (%p356) target = $region36
        $region35: #{tpu_custom_call.1} parent=11 // pred_region
          _
        $region36: #{tpu_custom_call.1} parent=11 // pred_fallthru
          _
        // Predicated region
        $region37: #{tpu_custom_call.1} parent=11 // pred_check
          %p359 = pneg %p240
        $region38: #{tpu_custom_call.1} parent=11 // pred_check_branch
          %361 = sbr.rel (%p359) target = $region40
        $region39: #{tpu_custom_call.1} parent=11 // pred_region
          _
        $region40: #{tpu_custom_call.1} parent=11 // pred_fallthru
          _
      $region12: #{tpu_custom_call.1} parent=5 // pred_fallthru
        _
      %p362 = scmp.lt.s32.totalorder %s25, 2
      // Predicated region
      $region41: #{tpu_custom_call.1} parent=5 // pred_check
        %p363 = pneg %p362
      $region42: #{tpu_custom_call.1} parent=5 // pred_check_branch
        %365 = sbr.rel (%p363) target = $region44
      $region43: #{tpu_custom_call.1} parent=5 // pred_region
        // Predicated region
        $region45: #{tpu_custom_call.1} parent=43 // pred_check
          %p366 = pneg %p59
        $region46: #{tpu_custom_call.1} parent=43 // pred_check_branch
          %368 = sbr.rel (%p366) target = $region48
        $region47: #{tpu_custom_call.1} parent=43 // pred_region
          %s369 = sadd.s32 %s32, %s33
          %p370 = scmp.lt.s32.totalorder %s369, 1
          %s371 = scalar_select %p370, %s369, 1
          %s372 = smul.addr %s371, 3
          %s373 = smul.addr %s372, 8
          %s374 = scalar_lea.vmem %s0, %s373
          %s375 = sadd.s32 %s32, %s33
        $region48: #{tpu_custom_call.1} parent=43 // pred_fallthru
          _
        // Predicated region
        $region49: #{tpu_custom_call.1} parent=43 // pred_check
          %p376 = pneg %p87
        $region50: #{tpu_custom_call.1} parent=43 // pred_check_branch
          %378 = sbr.rel (%p376) target = $region52
        $region51: #{tpu_custom_call.1} parent=43 // pred_region
          %s379 = smul.u32 2, %s33
          %p380 = scmp.lt.s32.totalorder %s32, 1
          %s381 = scalar_select %p380, %s32, 1
          %p382 = scmp.lt.s32.totalorder %s379, 1
          %s383 = scalar_select %p382, %s379, 1
          %s384 = smul.addr %s381, 2
          %s385 = sadd.s32 %s383, %s384
          %s386 = smul.addr %s385, 8
          %s387 = scalar_lea.vmem %s1, %s386
          %s388 = smul.u32 2, %s33
        $region52: #{tpu_custom_call.1} parent=43 // pred_fallthru
          _
      $region44: #{tpu_custom_call.1} parent=5 // pred_fallthru
        _
      %p389 = scmp.le.s32.totalorder 1, %s25
      %p390 = scmp.lt.s32.totalorder %s25, 3
      %p391 = pnand %p389, %p390
      %p392 = pneg %p391
      // Predicated region
      $region53: #{tpu_custom_call.1} parent=5 // pred_check
        _
      $region54: #{tpu_custom_call.1} parent=5 // pred_check_branch
        %394 = sbr.rel (%p391) target = $region56
      $region55: #{tpu_custom_call.1} parent=5 // pred_region
        %s395 = ssub.s32 %s25, 1
        // Predicated region
        $region57: #{tpu_custom_call.1} parent=55 // pred_check
          %p396 = pneg %p114
        $region58: #{tpu_custom_call.1} parent=55 // pred_check_branch
          %398 = sbr.rel (%p396) target = $region60
        $region59: #{tpu_custom_call.1} parent=55 // pred_region
          %399 = dma.done [#allocation4], 6144
        $region60: #{tpu_custom_call.1} parent=55 // pred_fallthru
          _
        // Predicated region
        $region61: #{tpu_custom_call.1} parent=55 // pred_check
          %p400 = pneg %p135
        $region62: #{tpu_custom_call.1} parent=55 // pred_check_branch
          %402 = sbr.rel (%p400) target = $region64
        $region63: #{tpu_custom_call.1} parent=55 // pred_region
          %403 = dma.done [#allocation7], 6144
        $region64: #{tpu_custom_call.1} parent=55 // pred_fallthru
          _
        // Predicated region
        $region65: #{tpu_custom_call.1} parent=55 // pred_check
          %p404 = pneg %p156
        $region66: #{tpu_custom_call.1} parent=55 // pred_check_branch
          %406 = sbr.rel (%p404) target = $region68
        $region67: #{tpu_custom_call.1} parent=55 // pred_region
          %407 = dma.done [#allocation7], 2048
        $region68: #{tpu_custom_call.1} parent=55 // pred_fallthru
          _
        %s408 = sadd.s32 %s34, %s35
        %p409 = scmp.lt.s32.totalorder %s408, 1
        %s410 = scalar_select %p409, %s408, 1
        %s411 = smul.addr %s410, 3
        %s412 = smul.addr %s411, 8
        %s413 = scalar_lea.vmem %s0, %s412
        %p414 = pneg %p65
        %p415 = pneg %p62
        %s416 = smul.u32 2, %s35
        %p417 = scmp.lt.s32.totalorder %s34, 1
        %s418 = scalar_select %p417, %s34, 1
        %p419 = scmp.lt.s32.totalorder %s416, 1
        %s420 = scalar_select %p419, %s416, 1
        %s421 = smul.addr %s418, 2
        %s422 = sadd.s32 %s420, %s421
        %s423 = smul.addr %s422, 8
        %s424 = scalar_lea.vmem %s1, %s423
        %p425 = pneg %p93
        %p426 = pneg %p90
        %p427 = pneg %p114
        %p428 = pneg %p111
        %p429 = pneg %p135
        %p430 = pneg %p132
        %p431 = pneg %p156
        %p432 = pneg %p153
        %p433 = pneg %p177
        %p434 = pneg %p174
        %p435 = pneg %p198
        %p436 = pneg %p195
        %p437 = pneg %p219
        %p438 = pneg %p216
        %p439 = pneg %p240
        %p440 = pneg %p237
        %p441 = pneg %p268
        %p442 = pneg %p265
        %s443 = sand.u32 %s255, 1
        %s444 = scalar_lea.sflag [#allocation5], %s443
        %s445 = sand.u32 %s255, 1
        %s446 = smul.addr %s445, 8
        %s447 = scalar_lea.vmem [#allocation9], %s446
        %p448 = pneg %p296
        %p449 = pneg %p293
        %s450 = sand.u32 %s283, 1
        %s451 = scalar_lea.sflag [#allocation11], %s450
        %s452 = sand.u32 %s283, 1
        %s453 = smul.addr %s452, 8
        %s454 = scalar_lea.vmem [#allocation10], %s453
        %s455 = sadd.s32 %s34, %s35
        %p456 = scmp.lt.s32.totalorder %s455, 1
        %s457 = scalar_select %p456, %s455, 1
        %s458 = smul.addr %s457, 3
        %s459 = smul.addr %s458, 8
        %s460 = scalar_lea.vmem %s0, %s459
        %s461 = sadd.s32 %s34, %s35
        %s462 = smul.u32 2, %s35
        %p463 = scmp.lt.s32.totalorder %s34, 1
        %s464 = scalar_select %p463, %s34, 1
        %p465 = scmp.lt.s32.totalorder %s462, 1
        %s466 = scalar_select %p465, %s462, 1
        %s467 = smul.addr %s464, 2
        %s468 = sadd.s32 %s466, %s467
        %s469 = smul.addr %s468, 8
        %s470 = scalar_lea.vmem %s1, %s469
        %s471 = smul.u32 2, %s35
        %v472 = vld [vmem:[%s460] sm:$0xff]
        %v473 = vld [vmem:[%s460 + $0x8] sm:$0xff]
        %v474 = vld [vmem:[%s460 + $0x10] sm:$0x1]
        %v475 = vld [vmem:[%s460 + $0x1] sm:$0xff]
        %v476 = vld [vmem:[%s460 + $0x9] sm:$0xff]
        %v477 = vld [vmem:[%s460 + $0x11] sm:$0x1]
        %v478 = vld [vmem:[%s460 + $0x2] sm:$0xff]
        %v479 = vld [vmem:[%s460 + $0xa] sm:$0xff]
        %v480 = vld [vmem:[%s460 + $0x12] sm:$0x1]
        %v481 = vld [vmem:[#allocation3] sm:$0xff]
        %v482 = vld [vmem:[#allocation3 + $0x8] sm:$0xff]
        %v483 = vld [vmem:[#allocation3 + $0x10] sm:$0xff]
        %v484 = vld [vmem:[#allocation3 + $0x18] sm:$0xff]
        %v485 = vld [vmem:[#allocation3 + $0x20] sm:$0xff]
        %v486 = vld [vmem:[#allocation3 + $0x28] sm:$0xff]
        %v487 = vld [vmem:[#allocation3 + $0x30] sm:$0xff]
        %v488 = vld [vmem:[#allocation3 + $0x38] sm:$0xff]
        %v489 = vld [vmem:[#allocation3 + $0x40] sm:$0xff]
        %v490 = vld [vmem:[#allocation3 + $0x48] sm:$0xff]
        %v491 = vld [vmem:[#allocation3 + $0x50] sm:$0xff]
        %v492 = vld [vmem:[#allocation3 + $0x58] sm:$0xff]
        %v493 = vld [vmem:[#allocation3 + $0x60] sm:$0xff]
        %v494 = vld [vmem:[#allocation3 + $0x68] sm:$0xff]
        %v495 = vld [vmem:[#allocation3 + $0x70] sm:$0xff]
        %v496 = vld [vmem:[#allocation3 + $0x78] sm:$0xff]
        %v497 = vld [vmem:[#allocation3 + $0x80] sm:$0xff]
        %v498 = vld [vmem:[#allocation3 + $0x88] sm:$0xff]
        %v499 = vld [vmem:[#allocation3 + $0x90] sm:$0xff]
        %v500 = vld [vmem:[#allocation3 + $0x98] sm:$0xff]
        %v501 = vld [vmem:[#allocation3 + $0xa0] sm:$0xff]
        %v502 = vld [vmem:[#allocation3 + $0xa8] sm:$0xff]
        %v503 = vld [vmem:[#allocation3 + $0xb0] sm:$0xff]
        %v504 = vld [vmem:[#allocation3 + $0xb8] sm:$0xff]
        %v505 = vld [vmem:[#allocation3 + $0xc0] sm:$0xff]
        %v506 = vld [vmem:[#allocation3 + $0xc8] sm:$0xff]
        %v507 = vld [vmem:[#allocation3 + $0xd0] sm:$0xff]
        %v508 = vld [vmem:[#allocation3 + $0xd8] sm:$0xff]
        %v509 = vld [vmem:[#allocation3 + $0xe0] sm:$0xff]
        %v510 = vld [vmem:[#allocation3 + $0xe8] sm:$0xff]
        %v511 = vld [vmem:[#allocation3 + $0xf0] sm:$0xff]
        %v512 = vld [vmem:[#allocation3 + $0xf8] sm:$0xff]
        %v513 = vld [vmem:[#allocation3 + $0x100] sm:$0xff]
        %v514 = vld [vmem:[#allocation3 + $0x108] sm:$0xff]
        %v515 = vld [vmem:[#allocation3 + $0x110] sm:$0xff]
        %v516 = vld [vmem:[#allocation3 + $0x118] sm:$0xff]
        %v517 = vld [vmem:[#allocation3 + $0x120] sm:$0xff]
        %v518 = vld [vmem:[#allocation3 + $0x128] sm:$0xff]
        %v519 = vld [vmem:[#allocation3 + $0x130] sm:$0xff]
        %v520 = vld [vmem:[#allocation3 + $0x138] sm:$0xff]
        %v521 = vld [vmem:[#allocation3 + $0x140] sm:$0xff]
        %v522 = vld [vmem:[#allocation3 + $0x148] sm:$0xff]
        %v523 = vld [vmem:[#allocation3 + $0x150] sm:$0xff]
        %v524 = vld [vmem:[#allocation3 + $0x158] sm:$0xff]
        %v525 = vld [vmem:[#allocation3 + $0x160] sm:$0xff]
        %v526 = vld [vmem:[#allocation3 + $0x168] sm:$0xff]
        %v527 = vld [vmem:[#allocation3 + $0x170] sm:$0xff]
        %v528 = vld [vmem:[#allocation3 + $0x178] sm:$0xff]
        %529 = vmatprep.subr.mxu0 0.0
        %530 = vmatpush1.msra.mxu0 %v481
        %531 = vmatprep.subr.mxu0 0.0
        %532 = vmatpush1.msra.mxu0 %v482
        %533 = vmatprep.subr.mxu0 0.0
        %534 = vmatpush1.msra.mxu0 %v483
        %535 = vmatprep.subr.mxu0 0.0
        %536 = vmatpush1.msra.mxu0 %v484
        %537 = vmatprep.subr.mxu0 0.0
        %538 = vmatpush1.msra.mxu0 %v485
        %539 = vmatprep.subr.mxu0 0.0
        %540 = vmatpush1.msra.mxu0 %v486
        %541 = vmatprep.subr.mxu0 0.0
        %542 = vmatpush1.msra.mxu0 %v487
        %543 = vmatprep.subr.mxu0 0.0
        %544 = vmatpush1.msra.mxu0 %v488
        %545 = vmatprep.subr.mxu0 0.0
        %546 = vmatpush1.msra.mxu0 %v489
        %547 = vmatprep.subr.mxu0 0.0
        %548 = vmatpush1.msra.mxu0 %v490
        %549 = vmatprep.subr.mxu0 0.0
        %550 = vmatpush1.msra.mxu0 %v491
        %551 = vmatprep.subr.mxu0 0.0
        %552 = vmatpush1.msra.mxu0 %v492
        %553 = vmatprep.subr.mxu0 0.0
        %554 = vmatpush1.msra.mxu0 %v493
        %555 = vmatprep.subr.mxu0 0.0
        %556 = vmatpush1.msra.mxu0 %v494
        %557 = vmatprep.subr.mxu0 0.0
        %558 = vmatpush1.msra.mxu0 %v495
        %559 = vmatprep.subr.mxu0 0.0
        %560 = vmatpush1.msra.mxu0 %v496
        %561 = vmatprep.subr.mxu0 0.0
        %562 = vmatpush1.msra.mxu0 %v497
        %563 = vmatprep.subr.mxu0 0.0
        %564 = vmatpush1.msra.mxu0 %v498
        %565 = vmatprep.subr.mxu0 0.0
        %566 = vmatpush1.msra.mxu0 %v499
        %567 = vmatprep.subr.mxu0 0.0
        %568 = vmatpush1.msra.mxu0 %v500
        %569 = vmatprep.subr.mxu0 0.0
        %570 = vmatpush1.msra.mxu0 %v501
        %571 = vmatprep.subr.mxu0 0.0
        %572 = vmatpush1.msra.mxu0 %v502
        %573 = vmatprep.subr.mxu0 0.0
        %574 = vmatpush1.msra.mxu0 %v503
        %575 = vmatprep.subr.mxu0 0.0
        %576 = vmatpush1.msra.mxu0 %v504
        %577 = vmatprep.subr.mxu0 0.0
        %578 = vmatpush1.msra.mxu0 %v505
        %579 = vmatprep.subr.mxu0 0.0
        %580 = vmatpush1.msra.mxu0 %v506
        %581 = vmatprep.subr.mxu0 0.0
        %582 = vmatpush1.msra.mxu0 %v507
        %583 = vmatprep.subr.mxu0 0.0
        %584 = vmatpush1.msra.mxu0 %v508
        %585 = vmatprep.subr.mxu0 0.0
        %586 = vmatpush1.msra.mxu0 %v509
        %587 = vmatprep.subr.mxu0 0.0
        %588 = vmatpush1.msra.mxu0 %v510
        %589 = vmatprep.subr.mxu0 0.0
        %590 = vmatpush1.msra.mxu0 %v511
        %591 = vmatprep.subr.mxu0 0.0
        %592 = vmatpush1.msra.mxu0 %v512
        %593 = vmatprep.mubr.f32.mxu0 %v475
        %594 = vmatmul.mubr.f32.gmra.mrb[0].mxu0 %v472
        %v595 = vpop.f32.mrb[0].mxu0
        %v596 = vadd.f32 0.0, %v595
        %v597 = vpop.f32.mrb[0].mxu0
        %598 = vmatprep.mubr.f32.mxu0 %v476
        %599 = vmatmul.mubr.f32.gmra.mrb[0].mxu0 %v473
        %v600 = vpop.f32.mrb[0].mxu0
        %v601 = vadd.f32 0.0, %v600
        %v602 = vpop.f32.mrb[0].mxu0
        %603 = vmatprep.mubr.f32.mxu0 %v477
        %604 = vmatmul.mubr.f32.gmra.mrb[0].mxu0 %v474
        %v605 = vpop.f32.mrb[0].mxu0
        %v606 = vadd.f32 0.0, %v605
        %v607 = vpop.f32.mrb[0].mxu0
        %608 = vdwg.mxu0
        %609 = vmatprep.subr.mxu0 0.0
        %610 = vmatpush1.msra.mxu0 %v513
        %611 = vmatprep.subr.mxu0 0.0
        %612 = vmatpush1.msra.mxu0 %v514
        %613 = vmatprep.subr.mxu0 0.0
        %614 = vmatpush1.msra.mxu0 %v515
        %615 = vmatprep.subr.mxu0 0.0
        %616 = vmatpush1.msra.mxu0 %v516
        %617 = vmatprep.subr.mxu0 0.0
        %618 = vmatpush1.msra.mxu0 %v517
        %619 = vmatprep.subr.mxu0 0.0
        %620 = vmatpush1.msra.mxu0 %v518
        %621 = vmatprep.subr.mxu0 0.0
        %622 = vmatpush1.msra.mxu0 %v519
        %623 = vmatprep.subr.mxu0 0.0
        %624 = vmatpush1.msra.mxu0 %v520
        %625 = vmatprep.subr.mxu0 0.0
        %626 = vmatpush1.msra.mxu0 %v521
        %627 = vmatprep.subr.mxu0 0.0
        %628 = vmatpush1.msra.mxu0 %v522
        %629 = vmatprep.subr.mxu0 0.0
        %630 = vmatpush1.msra.mxu0 %v523
        %631 = vmatprep.subr.mxu0 0.0
        %632 = vmatpush1.msra.mxu0 %v524
        %633 = vmatprep.subr.mxu0 0.0
        %634 = vmatpush1.msra.mxu0 %v525
        %635 = vmatprep.subr.mxu0 0.0
        %636 = vmatpush1.msra.mxu0 %v526
        %637 = vmatprep.subr.mxu0 0.0
        %638 = vmatpush1.msra.mxu0 %v527
        %639 = vmatprep.subr.mxu0 0.0
        %640 = vmatpush1.msra.mxu0 %v528
        %641 = vmatprep.subr.mxu0 0.0
        %642 = vmatpush1.msra.mxu0 0.0
        %643 = vmatprep.subr.mxu0 0.0
        %644 = vmatpush1.msra.mxu0 0.0
        %645 = vmatprep.subr.mxu0 0.0
        %646 = vmatpush1.msra.mxu0 0.0
        %647 = vmatprep.subr.mxu0 0.0
        %648 = vmatpush1.msra.mxu0 0.0
        %649 = vmatprep.subr.mxu0 0.0
        %650 = vmatpush1.msra.mxu0 0.0
        %651 = vmatprep.subr.mxu0 0.0
        %652 = vmatpush1.msra.mxu0 0.0
        %653 = vmatprep.subr.mxu0 0.0
        %654 = vmatpush1.msra.mxu0 0.0
        %655 = vmatprep.subr.mxu0 0.0
        %656 = vmatpush1.msra.mxu0 0.0
        %657 = vmatprep.subr.mxu0 0.0
        %658 = vmatpush1.msra.mxu0 0.0
        %659 = vmatprep.subr.mxu0 0.0
        %660 = vmatpush1.msra.mxu0 0.0
        %661 = vmatprep.subr.mxu0 0.0
        %662 = vmatpush1.msra.mxu0 0.0
        %663 = vmatprep.subr.mxu0 0.0
        %664 = vmatpush1.msra.mxu0 0.0
        %665 = vmatprep.subr.mxu0 0.0
        %666 = vmatpush1.msra.mxu0 0.0
        %667 = vmatprep.subr.mxu0 0.0
        %668 = vmatpush1.msra.mxu0 0.0
        %669 = vmatprep.subr.mxu0 0.0
        %670 = vmatpush1.msra.mxu0 0.0
        %671 = vmatprep.subr.mxu0 0.0
        %672 = vmatpush1.msra.mxu0 0.0
        %673 = vmatprep.mubr.f32.mxu0 0.0
        %674 = vmatmul.mubr.f32.gmra.mrb[0].mxu0 %v478
        %v675 = vpop.f32.mrb[0].mxu0
        %v676 = vadd.f32 %v596, %v675
        %v677 = vpop.f32.mrb[0].mxu0
        %678 = vmatprep.mubr.f32.mxu0 0.0
        %679 = vmatmul.mubr.f32.gmra.mrb[0].mxu0 %v479
        %v680 = vpop.f32.mrb[0].mxu0
        %v681 = vadd.f32 %v601, %v680
        %v682 = vpop.f32.mrb[0].mxu0
        %683 = vmatprep.mubr.f32.mxu0 0.0
        %684 = vmatmul.mubr.f32.gmra.mrb[0].mxu0 %v480
        %v685 = vpop.f32.mrb[0].mxu0
        %v686 = vadd.f32 %v606, %v685
        %v687 = vpop.f32.mrb[0].mxu0
        %688 = vdwg.mxu0
        %v689 = vld [vmem:[%s5] sm:$0x1]
        %v691 = vlaneseq
        %v692 = vshrl.u32 %v691, 7
        %v693 = vsub.s32 0, %v692
        %v694 = vrot.slane %v689, %v693
        %v696 = vmul.f32 %v676, %v694
        %v697 = vmul.f32 %v681, %v694
        %v698 = vmul.f32 %v686, %v694
        %v699 = vld [vmem:[%s6] sm:$0x1]
        %v701 = vlaneseq
        %v702 = vshrl.u32 %v701, 7
        %v703 = vsub.s32 0, %v702
        %v704 = vrot.slane %v699, %v703
        %v706 = vadd.f32 %v696, %v704
        %v707 = vadd.f32 %v697, %v704
        %v708 = vadd.f32 %v698, %v704
        %v709 = vmax.f32 %v706, 0.0
        %v710 = vmax.f32 %v707, 0.0
        %v711 = vmax.f32 %v708, 0.0
        %s712 = smul.u32 %s35, 16
        %s713 = ssub.s32 %s712, 1
        %v714 = vlaneseq
        %v715 = vshrl.u32 %v714, 7
        %v716 = vadd.s32 %v715, 8
        %v717 = vadd.s32 %v715, 16
        %v718 = vstv %s713
        %v719 = vadd.s32 %v718, %v715
        %v720 = vadd.s32 %v718, %v716
        %v721 = vadd.s32 %v718, %v717
        %vm722 = vcmp.ge.s32.totalorder %v719, 0
        %vm723 = vcmp.ge.s32.totalorder %v720, 0
        %vm724 = vcmp.ge.s32.totalorder %v721, 0
        %vm725 = vcmp.lt.s32.totalorder %v719, 16
        %vm726 = vcmp.lt.s32.totalorder %v720, 16
        %vm727 = vcmp.lt.s32.totalorder %v721, 16
        %vm728 = vmand %vm722, %vm725
        %vm729 = vmand %vm723, %vm726
        %vm730 = vmand %vm724, %vm727
        %v731 = vsel %vm728, 1, 0
        %v732 = vsel %vm729, 1, 0
        %v733 = vsel %vm730, 1, 0
        %vm734 = vcmp.eq.s32.totalorder %v731, 1
        %vm735 = vcmp.eq.s32.totalorder %v732, 1
        %vm736 = vcmp.eq.s32.totalorder %v733, 1
        %v737 = vsel %vm734, %v709, 0.0
        %v738 = vsel %vm735, %v710, 0.0
        %v739 = vsel %vm736, %v711, 0.0
        %740 = vst [vmem:[#allocation2] sm:$0xff] %v737
        %741 = vst [vmem:[#allocation2 + $0x8] sm:$0xff] %v738
        %742 = vst [vmem:[#allocation2 + $0x10] sm:$0x1] %v739
        %v743 = vld [vmem:[#allocation2] ss:$2 sm:$0xff]
        %s744 = scalar_lea.vmem [#allocation2], 1
        %v745 = vld [vmem:[%s744] ss:$2 sm:$0xff]
        %s746 = scalar_lea.vmem [#allocation2], 2
        %v747 = vld [vmem:[%s746] ss:$2 sm:$0xff]
        %v748 = vld [vmem:[#allocation6] sm:$0xff]
        %v749 = vld [vmem:[#allocation6 + $0x8] sm:$0xff]
        %v750 = vld [vmem:[#allocation6 + $0x10] sm:$0xff]
        %v751 = vld [vmem:[#allocation6 + $0x18] sm:$0xff]
        %v752 = vld [vmem:[#allocation6 + $0x20] sm:$0xff]
        %v753 = vld [vmem:[#allocation6 + $0x28] sm:$0xff]
        %v754 = vld [vmem:[#allocation6 + $0x30] sm:$0xff]
        %v755 = vld [vmem:[#allocation6 + $0x38] sm:$0xff]
        %v756 = vld [vmem:[#allocation6 + $0x40] sm:$0xff]
        %v757 = vld [vmem:[#allocation6 + $0x48] sm:$0xff]
        %v758 = vld [vmem:[#allocation6 + $0x50] sm:$0xff]
        %v759 = vld [vmem:[#allocation6 + $0x58] sm:$0xff]
        %v760 = vld [vmem:[#allocation6 + $0x60] sm:$0xff]
        %v761 = vld [vmem:[#allocation6 + $0x68] sm:$0xff]
        %v762 = vld [vmem:[#allocation6 + $0x70] sm:$0xff]
        %v763 = vld [vmem:[#allocation6 + $0x78] sm:$0xff]
        %v764 = vld [vmem:[#allocation6 + $0x80] sm:$0xff]
        %v765 = vld [vmem:[#allocation6 + $0x88] sm:$0xff]
        %v766 = vld [vmem:[#allocation6 + $0x90] sm:$0xff]
        %v767 = vld [vmem:[#allocation6 + $0x98] sm:$0xff]
        %v768 = vld [vmem:[#allocation6 + $0xa0] sm:$0xff]
        %v769 = vld [vmem:[#allocation6 + $0xa8] sm:$0xff]
        %v770 = vld [vmem:[#allocation6 + $0xb0] sm:$0xff]
        %v771 = vld [vmem:[#allocation6 + $0xb8] sm:$0xff]
        %v772 = vld [vmem:[#allocation6 + $0xc0] sm:$0xff]
        %v773 = vld [vmem:[#allocation6 + $0xc8] sm:$0xff]
        %v774 = vld [vmem:[#allocation6 + $0xd0] sm:$0xff]
        %v775 = vld [vmem:[#allocation6 + $0xd8] sm:$0xff]
        %v776 = vld [vmem:[#allocation6 + $0xe0] sm:$0xff]
        %v777 = vld [vmem:[#allocation6 + $0xe8] sm:$0xff]
        %v778 = vld [vmem:[#allocation6 + $0xf0] sm:$0xff]
        %v779 = vld [vmem:[#allocation6 + $0xf8] sm:$0xff]
        %v780 = vld [vmem:[#allocation6 + $0x100] sm:$0xff]
        %v781 = vld [vmem:[#allocation6 + $0x108] sm:$0xff]
        %v782 = vld [vmem:[#allocation6 + $0x110] sm:$0xff]
        %v783 = vld [vmem:[#allocation6 + $0x118] sm:$0xff]
        %v784 = vld [vmem:[#allocation6 + $0x120] sm:$0xff]
        %v785 = vld [vmem:[#allocation6 + $0x128] sm:$0xff]
        %v786 = vld [vmem:[#allocation6 + $0x130] sm:$0xff]
        %v787 = vld [vmem:[#allocation6 + $0x138] sm:$0xff]
        %v788 = vld [vmem:[#allocation6 + $0x140] sm:$0xff]
        %v789 = vld [vmem:[#allocation6 + $0x148] sm:$0xff]
        %v790 = vld [vmem:[#allocation6 + $0x150] sm:$0xff]
        %v791 = vld [vmem:[#allocation6 + $0x158] sm:$0xff]
        %v792 = vld [vmem:[#allocation6 + $0x160] sm:$0xff]
        %v793 = vld [vmem:[#allocation6 + $0x168] sm:$0xff]
        %v794 = vld [vmem:[#allocation6 + $0x170] sm:$0xff]
        %v795 = vld [vmem:[#allocation6 + $0x178] sm:$0xff]
        %v796 = vld [vmem:[%s470] ss:$2 sm:$0xff]
        %s797 = scalar_lea.vmem %s470, 1
        %v798 = vld [vmem:[%s797] ss:$2 sm:$0xff]
        %v799 = vmax.f32 %v796, %v798
        %v800 = vld [vmem:[#allocation8] sm:$0xff]
        %v801 = vld [vmem:[#allocation8 + $0x8] sm:$0xff]
        %v802 = vld [vmem:[#allocation8 + $0x10] sm:$0xff]
        %v803 = vld [vmem:[#allocation8 + $0x18] sm:$0xff]
        %v804 = vld [vmem:[#allocation8 + $0x20] sm:$0xff]
        %v805 = vld [vmem:[#allocation8 + $0x28] sm:$0xff]
        %v806 = vld [vmem:[#allocation8 + $0x30] sm:$0xff]
        %v807 = vld [vmem:[#allocation8 + $0x38] sm:$0xff]
        %v808 = vld [vmem:[#allocation8 + $0x40] sm:$0xff]
        %v809 = vld [vmem:[#allocation8 + $0x48] sm:$0xff]
        %v810 = vld [vmem:[#allocation8 + $0x50] sm:$0xff]
        %v811 = vld [vmem:[#allocation8 + $0x58] sm:$0xff]
        %v812 = vld [vmem:[#allocation8 + $0x60] sm:$0xff]
        %v813 = vld [vmem:[#allocation8 + $0x68] sm:$0xff]
        %v814 = vld [vmem:[#allocation8 + $0x70] sm:$0xff]
        %v815 = vld [vmem:[#allocation8 + $0x78] sm:$0xff]
        %816 = vmatprep.subr.mxu0 0.0
        %817 = vmatpush1.msra.mxu0 %v800
        %818 = vmatprep.subr.mxu0 0.0
        %819 = vmatpush1.msra.mxu0 %v801
        %820 = vmatprep.subr.mxu0 0.0
        %821 = vmatpush1.msra.mxu0 %v802
        %822 = vmatprep.subr.mxu0 0.0
        %823 = vmatpush1.msra.mxu0 %v803
        %824 = vmatprep.subr.mxu0 0.0
        %825 = vmatpush1.msra.mxu0 %v804
        %826 = vmatprep.subr.mxu0 0.0
        %827 = vmatpush1.msra.mxu0 %v805
        %828 = vmatprep.subr.mxu0 0.0
        %829 = vmatpush1.msra.mxu0 %v806
        %830 = vmatprep.subr.mxu0 0.0
        %831 = vmatpush1.msra.mxu0 %v807
        %832 = vmatprep.subr.mxu0 0.0
        %833 = vmatpush1.msra.mxu0 %v808
        %834 = vmatprep.subr.mxu0 0.0
        %835 = vmatpush1.msra.mxu0 %v809
        %836 = vmatprep.subr.mxu0 0.0
        %837 = vmatpush1.msra.mxu0 %v810
        %838 = vmatprep.subr.mxu0 0.0
        %839 = vmatpush1.msra.mxu0 %v811
        %840 = vmatprep.subr.mxu0 0.0
        %841 = vmatpush1.msra.mxu0 %v812
        %842 = vmatprep.subr.mxu0 0.0
        %843 = vmatpush1.msra.mxu0 %v813
        %844 = vmatprep.subr.mxu0 0.0
        %845 = vmatpush1.msra.mxu0 %v814
        %846 = vmatprep.subr.mxu0 0.0
        %847 = vmatpush1.msra.mxu0 %v815
        %848 = vmatprep.subr.mxu0 0.0
        %849 = vmatpush1.msra.mxu0 0.0
        %850 = vmatprep.subr.mxu0 0.0
        %851 = vmatpush1.msra.mxu0 0.0
        %852 = vmatprep.subr.mxu0 0.0
        %853 = vmatpush1.msra.mxu0 0.0
        %854 = vmatprep.subr.mxu0 0.0
        %855 = vmatpush1.msra.mxu0 0.0
        %856 = vmatprep.subr.mxu0 0.0
        %857 = vmatpush1.msra.mxu0 0.0
        %858 = vmatprep.subr.mxu0 0.0
        %859 = vmatpush1.msra.mxu0 0.0
        %860 = vmatprep.subr.mxu0 0.0
        %861 = vmatpush1.msra.mxu0 0.0
        %862 = vmatprep.subr.mxu0 0.0
        %863 = vmatpush1.msra.mxu0 0.0
        %864 = vmatprep.subr.mxu0 0.0
        %865 = vmatpush1.msra.mxu0 0.0
        %866 = vmatprep.subr.mxu0 0.0
        %867 = vmatpush1.msra.mxu0 0.0
        %868 = vmatprep.subr.mxu0 0.0
        %869 = vmatpush1.msra.mxu0 0.0
        %870 = vmatprep.subr.mxu0 0.0
        %871 = vmatpush1.msra.mxu0 0.0
        %872 = vmatprep.subr.mxu0 0.0
        %873 = vmatpush1.msra.mxu0 0.0
        %874 = vmatprep.subr.mxu0 0.0
        %875 = vmatpush1.msra.mxu0 0.0
        %876 = vmatprep.subr.mxu0 0.0
        %877 = vmatpush1.msra.mxu0 0.0
        %878 = vmatprep.subr.mxu0 0.0
        %879 = vmatpush1.msra.mxu0 0.0
        %880 = vmatprep.mubr.f32.mxu0 0.0
        %881 = vmatmul.mubr.f32.gmra.mrb[0].mxu0 %v799
        %v882 = vpop.f32.mrb[0].mxu0
        %v883 = vadd.f32 0.0, %v882
        %v884 = vpop.f32.mrb[0].mxu0
        %885 = vdwg.mxu0
        %886 = vmatprep.subr.mxu0 0.0
        %887 = vmatpush1.msra.mxu0 %v748
        %888 = vmatprep.subr.mxu0 0.0
        %889 = vmatpush1.msra.mxu0 %v749
        %890 = vmatprep.subr.mxu0 0.0
        %891 = vmatpush1.msra.mxu0 %v750
        %892 = vmatprep.subr.mxu0 0.0
        %893 = vmatpush1.msra.mxu0 %v751
        %894 = vmatprep.subr.mxu0 0.0
        %895 = vmatpush1.msra.mxu0 %v752
        %896 = vmatprep.subr.mxu0 0.0
        %897 = vmatpush1.msra.mxu0 %v753
        %898 = vmatprep.subr.mxu0 0.0
        %899 = vmatpush1.msra.mxu0 %v754
        %900 = vmatprep.subr.mxu0 0.0
        %901 = vmatpush1.msra.mxu0 %v755
        %902 = vmatprep.subr.mxu0 0.0
        %903 = vmatpush1.msra.mxu0 %v756
        %904 = vmatprep.subr.mxu0 0.0
        %905 = vmatpush1.msra.mxu0 %v757
        %906 = vmatprep.subr.mxu0 0.0
        %907 = vmatpush1.msra.mxu0 %v758
        %908 = vmatprep.subr.mxu0 0.0
        %909 = vmatpush1.msra.mxu0 %v759
        %910 = vmatprep.subr.mxu0 0.0
        %911 = vmatpush1.msra.mxu0 %v760
        %912 = vmatprep.subr.mxu0 0.0
        %913 = vmatpush1.msra.mxu0 %v761
        %914 = vmatprep.subr.mxu0 0.0
        %915 = vmatpush1.msra.mxu0 %v762
        %916 = vmatprep.subr.mxu0 0.0
        %917 = vmatpush1.msra.mxu0 %v763
        %918 = vmatprep.subr.mxu0 0.0
        %919 = vmatpush1.msra.mxu0 %v764
        %920 = vmatprep.subr.mxu0 0.0
        %921 = vmatpush1.msra.mxu0 %v765
        %922 = vmatprep.subr.mxu0 0.0
        %923 = vmatpush1.msra.mxu0 %v766
        %924 = vmatprep.subr.mxu0 0.0
        %925 = vmatpush1.msra.mxu0 %v767
        %926 = vmatprep.subr.mxu0 0.0
        %927 = vmatpush1.msra.mxu0 %v768
        %928 = vmatprep.subr.mxu0 0.0
        %929 = vmatpush1.msra.mxu0 %v769
        %930 = vmatprep.subr.mxu0 0.0
        %931 = vmatpush1.msra.mxu0 %v770
        %932 = vmatprep.subr.mxu0 0.0
        %933 = vmatpush1.msra.mxu0 %v771
        %934 = vmatprep.subr.mxu0 0.0
        %935 = vmatpush1.msra.mxu0 %v772
        %936 = vmatprep.subr.mxu0 0.0
        %937 = vmatpush1.msra.mxu0 %v773
        %938 = vmatprep.subr.mxu0 0.0
        %939 = vmatpush1.msra.mxu0 %v774
        %940 = vmatprep.subr.mxu0 0.0
        %941 = vmatpush1.msra.mxu0 %v775
        %942 = vmatprep.subr.mxu0 0.0
        %943 = vmatpush1.msra.mxu0 %v776
        %944 = vmatprep.subr.mxu0 0.0
        %945 = vmatpush1.msra.mxu0 %v777
        %946 = vmatprep.subr.mxu0 0.0
        %947 = vmatpush1.msra.mxu0 %v778
        %948 = vmatprep.subr.mxu0 0.0
        %949 = vmatpush1.msra.mxu0 %v779
        %950 = vmatprep.mubr.f32.mxu0 %v745
        %951 = vmatmul.mubr.f32.gmra.mrb[0].mxu0 %v743
        %v952 = vpop.f32.mrb[0].mxu0
        %v953 = vadd.f32 %v883, %v952
        %v954 = vpop.f32.mrb[0].mxu0
        %955 = vdwg.mxu0
        %956 = vmatprep.subr.mxu0 0.0
        %957 = vmatpush1.msra.mxu0 %v780
        %958 = vmatprep.subr.mxu0 0.0
        %959 = vmatpush1.msra.mxu0 %v781
        %960 = vmatprep.subr.mxu0 0.0
        %961 = vmatpush1.msra.mxu0 %v782
        %962 = vmatprep.subr.mxu0 0.0
        %963 = vmatpush1.msra.mxu0 %v783
        %964 = vmatprep.subr.mxu0 0.0
        %965 = vmatpush1.msra.mxu0 %v784
        %966 = vmatprep.subr.mxu0 0.0
        %967 = vmatpush1.msra.mxu0 %v785
        %968 = vmatprep.subr.mxu0 0.0
        %969 = vmatpush1.msra.mxu0 %v786
        %970 = vmatprep.subr.mxu0 0.0
        %971 = vmatpush1.msra.mxu0 %v787
        %972 = vmatprep.subr.mxu0 0.0
        %973 = vmatpush1.msra.mxu0 %v788
        %974 = vmatprep.subr.mxu0 0.0
        %975 = vmatpush1.msra.mxu0 %v789
        %976 = vmatprep.subr.mxu0 0.0
        %977 = vmatpush1.msra.mxu0 %v790
        %978 = vmatprep.subr.mxu0 0.0
        %979 = vmatpush1.msra.mxu0 %v791
        %980 = vmatprep.subr.mxu0 0.0
        %981 = vmatpush1.msra.mxu0 %v792
        %982 = vmatprep.subr.mxu0 0.0
        %983 = vmatpush1.msra.mxu0 %v793
        %984 = vmatprep.subr.mxu0 0.0
        %985 = vmatpush1.msra.mxu0 %v794
        %986 = vmatprep.subr.mxu0 0.0
        %987 = vmatpush1.msra.mxu0 %v795
        %988 = vmatprep.subr.mxu0 0.0
        %989 = vmatpush1.msra.mxu0 0.0
        %990 = vmatprep.subr.mxu0 0.0
        %991 = vmatpush1.msra.mxu0 0.0
        %992 = vmatprep.subr.mxu0 0.0
        %993 = vmatpush1.msra.mxu0 0.0
        %994 = vmatprep.subr.mxu0 0.0
        %995 = vmatpush1.msra.mxu0 0.0
        %996 = vmatprep.subr.mxu0 0.0
        %997 = vmatpush1.msra.mxu0 0.0
        %998 = vmatprep.subr.mxu0 0.0
        %999 = vmatpush1.msra.mxu0 0.0
        %1000 = vmatprep.subr.mxu0 0.0
        %1001 = vmatpush1.msra.mxu0 0.0
        %1002 = vmatprep.subr.mxu0 0.0
        %1003 = vmatpush1.msra.mxu0 0.0
        %1004 = vmatprep.subr.mxu0 0.0
        %1005 = vmatpush1.msra.mxu0 0.0
        %1006 = vmatprep.subr.mxu0 0.0
        %1007 = vmatpush1.msra.mxu0 0.0
        %1008 = vmatprep.subr.mxu0 0.0
        %1009 = vmatpush1.msra.mxu0 0.0
        %1010 = vmatprep.subr.mxu0 0.0
        %1011 = vmatpush1.msra.mxu0 0.0
        %1012 = vmatprep.subr.mxu0 0.0
        %1013 = vmatpush1.msra.mxu0 0.0
        %1014 = vmatprep.subr.mxu0 0.0
        %1015 = vmatpush1.msra.mxu0 0.0
        %1016 = vmatprep.subr.mxu0 0.0
        %1017 = vmatpush1.msra.mxu0 0.0
        %1018 = vmatprep.subr.mxu0 0.0
        %1019 = vmatpush1.msra.mxu0 0.0
        %1020 = vmatprep.mubr.f32.mxu0 0.0
        %1021 = vmatmul.mubr.f32.gmra.mrb[0].mxu0 %v747
        %v1022 = vpop.f32.mrb[0].mxu0
        %v1023 = vadd.f32 %v953, %v1022
        %v1024 = vpop.f32.mrb[0].mxu0
        %1025 = vdwg.mxu0
        %1026 = vst [vmem:[%s454] sm:$0xff] %v1023
        %v1027 = vld [vmem:[%s7] sm:$0x1]
        %v1029 = vlaneseq
        %v1030 = vshrl.u32 %v1029, 7
        %v1031 = vsub.s32 0, %v1030
        %v1032 = vrot.slane %v1027, %v1031
        %v1034 = vmul.f32 %v1023, %v1032
        %v1035 = vld [vmem:[%s8] sm:$0x1]
        %v1037 = vlaneseq
        %v1038 = vshrl.u32 %v1037, 7
        %v1039 = vsub.s32 0, %v1038
        %v1040 = vrot.slane %v1035, %v1039
        %v1042 = vadd.f32 %v1034, %v1040
        %v1043 = vmax.f32 %v1042, 0.0
        %1044 = vst [vmem:[%s447] sm:$0xff] %v1043
        %s1045 = sand.u32 %s255, 1
        %s1046 = scalar_lea.sflag [#allocation5], %s1045
        %s1047 = sand.u32 %s255, 1
        %s1048 = smul.addr %s1047, 8
        %s1049 = scalar_lea.vmem [#allocation9], %s1048
        %s1050 = sand.u32 %s283, 1
        %s1051 = scalar_lea.sflag [#allocation11], %s1050
        %s1052 = sand.u32 %s283, 1
        %s1053 = smul.addr %s1052, 8
        %s1054 = scalar_lea.vmem [#allocation10], %s1053
        // Predicated region
        $region69: #{tpu_custom_call.1} parent=55 // pred_check
          %p1055 = pneg %p265
        $region70: #{tpu_custom_call.1} parent=55 // pred_check_branch
          %1057 = sbr.rel (%p1055) target = $region72
        $region71: #{tpu_custom_call.1} parent=55 // pred_region
          %s1059 = ssub.s32 128, 128
          %1060 = vsyncadd %s1046, %s1059
          %s1061 = sadd.s32 %s35, %s34
          %s1062 = smul.addr %s1061, 128
          %s1063 = scalar_lea.hbm %s9, %s1062
          %s1065 = sshll.u32 %s1049, 4
          %s1066 = int_to_ptr.vmem [resolvable:$true] %s1065
          %1068 = dma.vmem_to_hbm [thread:$0]  %s1066, 128, %s1063, %s1046
        $region72: #{tpu_custom_call.1} parent=55 // pred_fallthru
          _
        // Predicated region
        $region73: #{tpu_custom_call.1} parent=55 // pred_check
          %p1069 = pneg %p293
        $region74: #{tpu_custom_call.1} parent=55 // pred_check_branch
          %1071 = sbr.rel (%p1069) target = $region76
        $region75: #{tpu_custom_call.1} parent=55 // pred_region
          %s1073 = ssub.s32 128, 128
          %1074 = vsyncadd %s1051, %s1073
          %s1075 = sadd.s32 %s35, %s34
          %s1076 = smul.addr %s1075, 128
          %s1077 = scalar_lea.hbm %s10, %s1076
          %s1079 = sshll.u32 %s1054, 4
          %s1080 = int_to_ptr.vmem [resolvable:$true] %s1079
          %1082 = dma.vmem_to_hbm [thread:$0]  %s1080, 128, %s1077, %s1051
        $region76: #{tpu_custom_call.1} parent=55 // pred_fallthru
          _
      $region56: #{tpu_custom_call.1} parent=5 // pred_fallthru
        _
      %p1083 = scmp.le.s32.totalorder 2, %s25
      // Predicated region
      $region77: #{tpu_custom_call.1} parent=5 // pred_check
        %p1084 = pneg %p1083
      $region78: #{tpu_custom_call.1} parent=5 // pred_check_branch
        %1086 = sbr.rel (%p1084) target = $region80
      $region79: #{tpu_custom_call.1} parent=5 // pred_region
        %s1087 = ssub.s32 %s25, 2
        // Predicated region
        $region81: #{tpu_custom_call.1} parent=79 // pred_check
          %p1088 = pneg %p271
        $region82: #{tpu_custom_call.1} parent=79 // pred_check_branch
          %1090 = sbr.rel (%p1088) target = $region84
        $region83: #{tpu_custom_call.1} parent=79 // pred_region
          %s1091 = sand.u32 %s256, 1
          %s1092 = scalar_lea.sflag [#allocation5], %s1091
          %s1093 = sand.u32 %s256, 1
          %s1094 = smul.addr %s1093, 8
          %s1095 = scalar_lea.vmem [#allocation9], %s1094
          %1096 = dma.done %s1092, 128
        $region84: #{tpu_custom_call.1} parent=79 // pred_fallthru
          _
        // Predicated region
        $region85: #{tpu_custom_call.1} parent=79 // pred_check
          %p1097 = pneg %p299
        $region86: #{tpu_custom_call.1} parent=79 // pred_check_branch
          %1099 = sbr.rel (%p1097) target = $region88
        $region87: #{tpu_custom_call.1} parent=79 // pred_region
          %s1100 = sand.u32 %s284, 1
          %s1101 = scalar_lea.sflag [#allocation11], %s1100
          %s1102 = sand.u32 %s284, 1
          %s1103 = smul.addr %s1102, 8
          %s1104 = scalar_lea.vmem [#allocation10], %s1103
          %1105 = dma.done %s1101, 128
        $region88: #{tpu_custom_call.1} parent=79 // pred_fallthru
          _
      $region80: #{tpu_custom_call.1} parent=5 // pred_fallthru
        _
    $region6: #{tpu_custom_call.1} parent=1 // loop_footer
      %s29 = sadd.s32 1, %s25
    $region7: #{tpu_custom_call.1} parent=1 // loop_footer_branch
      %24 = sbr.rel target = $region3
    $region8: #{tpu_custom_call.1} parent=1 // loop_exit
      _
    %1106 = vsyncpa [#allocation4], 1
    %s1107 = scalar_lea.sflag [#allocation4], 1
    %1108 = vsyncpa %s1107, 1
    %1109 = vsyncpa [#allocation7], 1
    %1110 = vsyncpa [#allocation5], 1
    %s1111 = scalar_lea.sflag [#allocation5], 1
    %1112 = vsyncpa %s1111, 1
    %1113 = vsyncpa [#allocation11], 1
    %s1114 = scalar_lea.sflag [#allocation11], 1
    %1115 = vsyncpa %s1114, 1

</llo_original>
